<compile_context>
chip_gen: v7x
topology: tpu7x:2x2x1
jax: 0.10.0
libtpu: 0.0.40
codegen_flags: <defaults>
</compile_context>

<pallas_src>
import numpy as np
import jax
import jax.numpy as jnp
from jax.experimental import pallas as pl
from jax.experimental.pallas import tpu as pltpu

# ----------------------------- config (NGP defaults) ------------------------
SCALE = 0.5
LEVELS = 16
FEAT_PER_LEVEL = 2
LOG2_T = 19
T = 2 ** LOG2_T
BASE_RES = 16
MAX_RES = 2048
XYZ_NET_WIDTH = 64
XYZ_NET_OUT_DIM = 16
RGB_NET_WIDTH = 64
POS_ENC_DIM = LEVELS * FEAT_PER_LEVEL           # 32
SH_DIM = 16                                     # DirEncoder: SH degree 4
RGB_IN_DIM = SH_DIM + XYZ_NET_OUT_DIM           # 32
FEAT_DIM = POS_ENC_DIM + SH_DIM                 # 48 (fused activation stream)
OUT_ROWS = 4                                    # [sigma, r, g, b]

TN_MAX = 8192  # max rays per grid step (lane axis of the feature-major layout)

# Packed bf16 weight slab layout (row offsets are multiples of 16).
W_COLS = 64
R_WF = 0                      # (128, 48): block-diag [w1 | 0 ; 0 | wr0[:, :16]]
R_W2 = 128                    # (16, 64) : xyz-net output layer
R_W0H = 144                   # (64, 16) : wr0[:, 16:]  (h -> rgb hidden 0)
R_WR1 = 208                   # (64, 64) : rgb hidden 1
R_WR2 = 272                   # (3, 64)  : rgb output layer
W_ROWS = 288


def _round_up(n, m):
    return ((n + m - 1) // m) * m


def _select_tile_n(n, tn_max=TN_MAX):
    """Lane tile: multiple of 128, >=2 grid steps when n allows, capped at tn_max."""
    n128 = _round_up(max(n, 1), 128)
    half = _round_up(max(n128 // 2, 128), 128)
    return max(128, min(tn_max, half))


# ----------------------------- Pallas kernel --------------------------------
def ngp_heads_kernel(emb_ref, sh_ref, w_ref, out_ref):
    # emb_ref: (32, TN) bf16  hash embedding, feature-major
    # sh_ref : (16, TN) bf16  SH(dir), feature-major
    # w_ref  : (288, 64) bf16 packed weight slab (see R_* offsets)
    # out_ref: (4, TN) f32    rows = [sigma, r, g, b]
    feat = jnp.concatenate([emb_ref[...], sh_ref[...]], axis=0)          # (48, TN)

    wf = w_ref[R_WF:R_WF + 2 * XYZ_NET_WIDTH, 0:FEAT_DIM]                # (128, 48)
    w2 = w_ref[R_W2:R_W2 + XYZ_NET_OUT_DIM, :]                           # (16, 64)
    w0h = w_ref[R_W0H:R_W0H + RGB_NET_WIDTH, 0:XYZ_NET_OUT_DIM]          # (64, 16)
    wr1 = w_ref[R_WR1:R_WR1 + RGB_NET_WIDTH, :]                          # (64, 64)
    wr2 = w_ref[R_WR2:R_WR2 + 3, :]                                      # (3, 64)

    # Fused block-diagonal first matmul:
    #   rows 0:64    = w1 @ emb          (xyz-net hidden, pre-ReLU)
    #   rows 64:128  = wr0[:, :16] @ sh  (rgb hidden-0, direction part)
    z = jnp.dot(wf, feat, preferred_element_type=jnp.float32)            # (128, TN)

    h1 = jnp.maximum(z[0:XYZ_NET_WIDTH, :], 0.0).astype(jnp.bfloat16)    # (64, TN)
    h = jnp.dot(w2, h1, preferred_element_type=jnp.float32)              # (16, TN)

    # sigma = TruncExp(h[0]); forward is plain exp, in f32 (matches reference).
    sigma = jnp.exp(h[0:1, :])                                           # (1, TN)

    # rgb-net: hidden0 = wr0_sh @ sh (already in z) + wr0_h @ h, then 64->64->3.
    r = z[XYZ_NET_WIDTH:, :] + jnp.dot(w0h, h.astype(jnp.bfloat16),
                                       preferred_element_type=jnp.float32)
    r = jnp.maximum(r, 0.0).astype(jnp.bfloat16)
    r = jnp.dot(wr1, r, preferred_element_type=jnp.float32)
    r = jnp.maximum(r, 0.0).astype(jnp.bfloat16)
    pre = jnp.dot(wr2, r, preferred_element_type=jnp.float32)            # (3, TN)

    # Two lane-dense row-range stores; no transcendental work on the sigma row.
    out_ref[0:1, :] = sigma
    out_ref[1:OUT_ROWS, :] = jax.nn.sigmoid(pre)


def ngp_heads(emb_t, sh_t, w_slab, tn):
    """emb_t: (32, n_tot) bf16, sh_t: (16, n_tot) bf16, w_slab: (288, 64) bf16."""
    n_tot = emb_t.shape[1]
    grid = (n_tot // tn,)
    return pl.pallas_call(
        ngp_heads_kernel,
        out_shape=jax.ShapeDtypeStruct((OUT_ROWS, n_tot), jnp.float32),
        grid_spec=pltpu.PrefetchScalarGridSpec(
            num_scalar_prefetch=0,
            grid=grid,
            in_specs=[
                pl.BlockSpec((POS_ENC_DIM, tn), lambda i: (0, i)),
                pl.BlockSpec((SH_DIM, tn), lambda i: (0, i)),
                pl.BlockSpec((W_ROWS, W_COLS), lambda i: (0, 0)),
            ],
            out_specs=pl.BlockSpec((OUT_ROWS, tn), lambda i: (0, i)),
        ),
        compiler_params=pltpu.CompilerParams(
            dimension_semantics=("parallel",),
            vmem_limit_bytes=48 * 1024 * 1024,
        ),
    )(emb_t, sh_t, w_slab)


def _pack_weight_slab(params):
    """Pack all 5 (out, in) weight matrices into one (288, 64) bf16 slab."""
    w1 = params["w1"]            # (64, 32)
    w2 = params["w2"]            # (16, 64)
    wr0 = params["wr0"]          # (64, 32): cols 0:16 act on d_sh, cols 16:32 on h
    wr1 = params["wr1"]          # (64, 64)
    wr2 = params["wr2"]          # (3, 64)
    slab = jnp.zeros((W_ROWS, W_COLS), jnp.float32)
    slab = slab.at[R_WF:R_WF + XYZ_NET_WIDTH, 0:POS_ENC_DIM].set(w1)
    slab = slab.at[R_WF + XYZ_NET_WIDTH:R_WF + 2 * XYZ_NET_WIDTH,
                   POS_ENC_DIM:FEAT_DIM].set(wr0[:, :SH_DIM])
    slab = slab.at[R_W2:R_W2 + XYZ_NET_OUT_DIM, 0:XYZ_NET_WIDTH].set(w2)
    slab = slab.at[R_W0H:R_W0H + RGB_NET_WIDTH, 0:XYZ_NET_OUT_DIM].set(wr0[:, SH_DIM:])
    slab = slab.at[R_WR1:R_WR1 + RGB_NET_WIDTH, 0:RGB_NET_WIDTH].set(wr1)
    slab = slab.at[R_WR2:R_WR2 + 3, 0:RGB_NET_WIDTH].set(wr2)
    return slab.astype(jnp.bfloat16)


# ----------------------------- JAX glue: encoders ----------------------------
def make_resolutions():
    b = np.exp((np.log(MAX_RES) - np.log(BASE_RES)) / (LEVELS - 1))
    return np.floor(BASE_RES * (b ** np.arange(LEVELS))).astype(np.int32)


RESOLUTIONS = make_resolutions()


def hash_encode_t(x01, table):
    """x01: (N,3) in [0,1]; table: (L,T,F) f32 -> feature-major (L*F, N) f32."""
    n = x01.shape[0]
    res = jnp.asarray(RESOLUTIONS, jnp.float32)                       # (L,)
    pos = x01[None, :, :] * res[:, None, None]                        # (L, N, 3)
    pos0 = jnp.floor(pos)
    frac = pos - pos0
    pos0i = pos0.astype(jnp.int32)

    primes = jnp.array([1, 2654435761, 805459861], dtype=jnp.uint32)
    mask = jnp.uint32(T - 1)                                          # T is 2^k
    level_off = jnp.arange(LEVELS, dtype=jnp.uint32)[:, None] * jnp.uint32(T)
    tab_flat = table.reshape(LEVELS * T, FEAT_PER_LEVEL)

    acc = jnp.zeros((LEVELS, n, FEAT_PER_LEVEL), jnp.float32)
    for corner in range(8):
        offs = jnp.array([(corner >> 0) & 1, (corner >> 1) & 1,
                          (corner >> 2) & 1], dtype=jnp.int32)
        idx = (pos0i + offs[None, None, :]).astype(jnp.uint32)        # (L, N, 3)
        h = (idx[..., 0] * primes[0]) ^ (idx[..., 1] * primes[1]) ^ (idx[..., 2] * primes[2])
        h = (h & mask) + level_off                                    # (L, N)
        w = jnp.prod(jnp.where(offs[None, None, :] == 1, frac, 1.0 - frac), axis=-1)
        acc = acc + w[..., None] * tab_flat[h.astype(jnp.int32)]      # (L, N, F)
    # feature-major output; row index = 2*level + feature (matches torch layout)
    return jnp.transpose(acc, (0, 2, 1)).reshape(LEVELS * FEAT_PER_LEVEL, n)


def sh_encode_deg4_t(d):
    """Spherical harmonics deg 4 (16 comps), tcnn convention, feature-major (16, N)."""
    x, y, z = d[:, 0], d[:, 1], d[:, 2]
    xy, xz, yz = x * y, x * z, y * z
    x2, y2, z2 = x * x, y * y, z * z
    comps = [
        jnp.full_like(x, 0.28209479177387814),
        -0.48860251190291987 * y,
        0.48860251190291987 * z,
        -0.48860251190291987 * x,
        1.0925484305920792 * xy,
        -1.0925484305920792 * yz,
        0.94617469575755997 * z2 - 0.31539156525251999,
        -1.0925484305920792 * xz,
        0.54627421529603959 * (x2 - y2),
        0.59004358992664352 * y * (-3.0 * x2 + y2),
        2.8906114426405538 * xy * z,
        0.45704579946446572 * y * (1.0 - 5.0 * z2),
        0.3731763325901154 * z * (5.0 * z2 - 3.0),
        0.45704579946446572 * x * (1.0 - 5.0 * z2),
        1.4453057213202769 * z * (x2 - y2),
        0.59004358992664352 * x * (-x2 + 3.0 * y2),
    ]
    return jnp.stack(comps, axis=0)                                   # (16, N)


# ----------------------------- parameter init --------------------------------
def xavier_uniform(key, fan_out, fan_in):
    limit = float(np.sqrt(6.0 / (fan_in + fan_out)))
    return jax.random.uniform(key, (fan_out, fan_in), jnp.float32, -limit, limit)


def init_params(key):
    ks = jax.random.split(key, 6)
    return {
        # hash table (like tcnn: uniform(-1e-4, 1e-4))
        "table": jax.random.uniform(ks[0], (LEVELS, T, FEAT_PER_LEVEL),
                                    jnp.float32, -1e-4, 1e-4),
        # weights stored in PyTorch (out, in) layout, bias_enabled=False
        "w1": xavier_uniform(ks[1], XYZ_NET_WIDTH, POS_ENC_DIM),     # 32->64
        "w2": xavier_uniform(ks[2], XYZ_NET_OUT_DIM, XYZ_NET_WIDTH), # 64->16
        "wr0": xavier_uniform(ks[3], RGB_NET_WIDTH, RGB_IN_DIM),     # 32->64
        "wr1": xavier_uniform(ks[4], RGB_NET_WIDTH, RGB_NET_WIDTH),  # 64->64
        "wr2": xavier_uniform(ks[5], 3, RGB_NET_WIDTH),              # 64->3
    }


# ----------------------------- NGP forward -----------------------------------
@jax.jit
def ngp_forward(params, x, d):
    """x: (N,3) in [-scale, scale]; d: (N,3). Returns (sigmas (N,), rgbs (N,3))."""
    n = x.shape[0]
    tn = _select_tile_n(n)
    n_tot = _round_up(n, tn)
    pad = n_tot - n
    # Pad the cheap (N, 3) inputs so the encoders emit already-padded buffers
    # (no extra HBM pass over the (N, 48) activations).
    x_p = jnp.pad(x, ((0, pad), (0, 0)))
    d_p = jnp.pad(d, ((0, pad), (0, 0)), constant_values=1.0)

    x01 = (x_p + SCALE) / (2.0 * SCALE)                               # (n_tot, 3) in [0,1]
    emb_t = hash_encode_t(x01, params["table"]).astype(jnp.bfloat16)  # (32, n_tot)

    d_unit = d_p / jnp.maximum(jnp.linalg.norm(d_p, axis=1, keepdims=True), 1e-12)
    # DirEncoder((d+1)/2): tcnn SH maps [0,1] back to [-1,1] -> SH of unit dir.
    sh_t = sh_encode_deg4_t(d_unit).astype(jnp.bfloat16)              # (16, n_tot)

    w_slab = _pack_weight_slab(params)
    out = ngp_heads(emb_t, sh_t, w_slab, tn)                          # (4, n_tot) f32

    sigmas = out[0, :n]
    rgbs = out[1:OUT_ROWS, :n].T
    return sigmas, rgbs


# ----------------------------- pure-JAX reference (f32) ----------------------
@jax.jit
def ngp_ref(params, x, d):
    x01 = (x + SCALE) / (2.0 * SCALE)
    emb = hash_encode_t(x01, params["table"]).T                       # (N, 32) f32
    d_unit = d / jnp.maximum(jnp.linalg.norm(d, axis=1, keepdims=True), 1e-12)
    dsh = sh_encode_deg4_t(d_unit).T                                  # (N, 16) f32
    h = jnp.maximum(emb @ params["w1"].T, 0.0) @ params["w2"].T
    sigmas = jnp.exp(h[:, 0])
    rin = jnp.concatenate([dsh, h], axis=-1)
    r = jnp.maximum(rin @ params["wr0"].T, 0.0)
    r = jnp.maximum(r @ params["wr1"].T, 0.0)
    rgbs = jax.nn.sigmoid(r @ params["wr2"].T)
    return sigmas, rgbs


# ----------------------------- main ------------------------------------------
if __name__ == "__main__":
    key = jax.random.PRNGKey(0)
    pkey, xkey, dkey = jax.random.split(key, 3)
    params = init_params(pkey)

    N = 1000  # ragged vs. tile size: exercises padding + a 2-step grid
    x = jax.random.uniform(xkey, (N, 3), jnp.float32, -SCALE, SCALE)
    d = jax.random.normal(dkey, (N, 3), jnp.float32)

    sigmas, rgbs = ngp_forward(params, x, d)
    jax.block_until_ready((sigmas, rgbs))

    assert sigmas.shape == (N,) and rgbs.shape == (N, 3)
    assert bool(jnp.all(jnp.isfinite(sigmas))) and bool(jnp.all(jnp.isfinite(rgbs)))
    assert bool(jnp.all(rgbs >= 0.0)) and bool(jnp.all(rgbs <= 1.0))

    # Numerical check vs. pure-JAX f32 reference (bf16 MXU => loose tolerance).
    sig_ref, rgb_ref = ngp_ref(params, x, d)
    assert bool(jnp.allclose(sigmas, sig_ref, rtol=5e-2, atol=5e-2))
    assert bool(jnp.allclose(rgbs, rgb_ref, rtol=5e-2, atol=5e-2))

    print("KERNEL_OK")
</pallas_src>

<mosaic_0001>
module attributes {stable_mosaic.version = 11 : i64} {
  func.func private @main(%arg0: i32) attributes {dimension_semantics = [#tpu.dimension_semantics<core_parallel>], iteration_bounds = array<i64: 2>, tpu.core_type = #tpu.core_type<sc_scalar_subcore>, window_params = []} {
    return
  }
}

module attributes {stable_mosaic.version = 11 : i64} {
  func.func private @main(%arg0: i32) attributes {dimension_semantics = [#tpu.dimension_semantics<core_parallel>], iteration_bounds = array<i64: 2>, tpu.core_type = #tpu.core_type<sc_scalar_subcore>, window_params = []} {
    return
  }
}

module attributes {stable_mosaic.version = 11 : i64} {
  func.func @ngp_heads_kernel(%arg0: i32, %arg1: memref<32x512xbf16, #tpu.memory_space<vmem>>, %arg2: memref<16x512xbf16, #tpu.memory_space<vmem>>, %arg3: memref<288x64xbf16, #tpu.memory_space<vmem>>, %arg4: memref<4x512xf32, #tpu.memory_space<vmem>>) attributes {dimension_semantics = [#tpu.dimension_semantics<parallel>], iteration_bounds = array<i64: 2>, scalar_prefetch = 0 : i64, scratch_operands = 0 : i64, tpu.core_type = #tpu.core_type<tc>, window_params = [{transform_indices = @transform_0, window_bounds = array<i64: 32, 512>}, {transform_indices = @transform_1, window_bounds = array<i64: 16, 512>}, {pipeline_mode = #tpu.pipeline_mode<synchronous>, transform_indices = @transform_2, window_bounds = array<i64: 288, 64>}, {transform_indices = @transform_3, window_bounds = array<i64: 4, 512>}]} {
    %c0 = arith.constant 0 : index
    %c0_0 = arith.constant 0 : index
    %0 = vector.load %arg1[%c0, %c0_0] : memref<32x512xbf16, #tpu.memory_space<vmem>>, vector<32x512xbf16>
    %c0_1 = arith.constant 0 : index
    %c0_2 = arith.constant 0 : index
    %1 = vector.load %arg2[%c0_1, %c0_2] : memref<16x512xbf16, #tpu.memory_space<vmem>>, vector<16x512xbf16>
    %2 = tpu.concatenate %0, %1 in 0 : vector<32x512xbf16>, vector<16x512xbf16> -> vector<48x512xbf16>
    %c0_3 = arith.constant 0 : index
    %c0_4 = arith.constant 0 : index
    %3 = vector.load %arg3[%c0_3, %c0_4] : memref<288x64xbf16, #tpu.memory_space<vmem>>, vector<128x48xbf16>
    %c128 = arith.constant 128 : index
    %c0_5 = arith.constant 0 : index
    %4 = vector.load %arg3[%c128, %c0_5] : memref<288x64xbf16, #tpu.memory_space<vmem>>, vector<16x64xbf16>
    %c144 = arith.constant 144 : index
    %c0_6 = arith.constant 0 : index
    %5 = vector.load %arg3[%c144, %c0_6] : memref<288x64xbf16, #tpu.memory_space<vmem>>, vector<64x16xbf16>
    %c208 = arith.constant 208 : index
    %c0_7 = arith.constant 0 : index
    %6 = vector.load %arg3[%c208, %c0_7] : memref<288x64xbf16, #tpu.memory_space<vmem>>, vector<64x64xbf16>
    %c272 = arith.constant 272 : index
    %c0_8 = arith.constant 0 : index
    %7 = vector.load %arg3[%c272, %c0_8] : memref<288x64xbf16, #tpu.memory_space<vmem>>, vector<3x64xbf16>
    %cst = arith.constant dense<0.000000e+00> : vector<128x512xf32>
    %8 = tpu.matmul %3, %2, %cst {dimension_numbers = #tpu.dot_dimension_numbers<[1], [0], [0], [1], [0, 0, 1, 1], [], []>} : vector<128x48xbf16>, vector<48x512xbf16>, vector<128x512xf32> -> vector<128x512xf32>
    %9 = vector.extract_strided_slice %8 {offsets = [0, 0], sizes = [64, 512], strides = [1, 1]} : vector<128x512xf32> to vector<64x512xf32>
    %cst_9 = arith.constant 0.000000e+00 : f32
    %10 = vector.broadcast %cst_9 : f32 to vector<64x512xf32>
    %11 = arith.maximumf %9, %10 : vector<64x512xf32>
    %12 = arith.truncf %11 : vector<64x512xf32> to vector<64x512xbf16>
    %cst_10 = arith.constant dense<0.000000e+00> : vector<16x512xf32>
    %13 = tpu.matmul %4, %12, %cst_10 {dimension_numbers = #tpu.dot_dimension_numbers<[1], [0], [0], [1], [0, 0, 1, 1], [], []>} : vector<16x64xbf16>, vector<64x512xbf16>, vector<16x512xf32> -> vector<16x512xf32>
    %14 = vector.extract_strided_slice %13 {offsets = [0, 0], sizes = [1, 512], strides = [1, 1]} : vector<16x512xf32> to vector<1x512xf32>
    %15 = math.exp %14 : vector<1x512xf32>
    %16 = vector.extract_strided_slice %8 {offsets = [64, 0], sizes = [64, 512], strides = [1, 1]} : vector<128x512xf32> to vector<64x512xf32>
    %17 = arith.truncf %13 : vector<16x512xf32> to vector<16x512xbf16>
    %cst_11 = arith.constant dense<0.000000e+00> : vector<64x512xf32>
    %18 = tpu.matmul %5, %17, %cst_11 {dimension_numbers = #tpu.dot_dimension_numbers<[1], [0], [0], [1], [0, 0, 1, 1], [], []>} : vector<64x16xbf16>, vector<16x512xbf16>, vector<64x512xf32> -> vector<64x512xf32>
    %19 = arith.addf %16, %18 : vector<64x512xf32>
    %cst_12 = arith.constant 0.000000e+00 : f32
    %20 = vector.broadcast %cst_12 : f32 to vector<64x512xf32>
    %21 = arith.maximumf %19, %20 : vector<64x512xf32>
    %22 = arith.truncf %21 : vector<64x512xf32> to vector<64x512xbf16>
    %cst_13 = arith.constant dense<0.000000e+00> : vector<64x512xf32>
    %23 = tpu.matmul %6, %22, %cst_13 {dimension_numbers = #tpu.dot_dimension_numbers<[1], [0], [0], [1], [0, 0, 1, 1], [], []>} : vector<64x64xbf16>, vector<64x512xbf16>, vector<64x512xf32> -> vector<64x512xf32>
    %cst_14 = arith.constant 0.000000e+00 : f32
    %24 = vector.broadcast %cst_14 : f32 to vector<64x512xf32>
    %25 = arith.maximumf %23, %24 : vector<64x512xf32>
    %26 = arith.truncf %25 : vector<64x512xf32> to vector<64x512xbf16>
    %cst_15 = arith.constant dense<0.000000e+00> : vector<3x512xf32>
    %27 = tpu.matmul %7, %26, %cst_15 {dimension_numbers = #tpu.dot_dimension_numbers<[1], [0], [0], [1], [0, 0, 1, 1], [], []>} : vector<3x64xbf16>, vector<64x512xbf16>, vector<3x512xf32> -> vector<3x512xf32>
    %c0_16 = arith.constant 0 : index
    %c0_17 = arith.constant 0 : index
    %28 = vector.load %arg4[%c0_16, %c0_17] : memref<4x512xf32, #tpu.memory_space<vmem>>, vector<1x512xf32>
    tpu.vector_store %arg4[%c0_16, %c0_17], %15 {strides = array<i32>} : memref<4x512xf32, #tpu.memory_space<vmem>>, vector<1x512xf32>,
    %29 = arith.negf %27 : vector<3x512xf32>
    %30 = math.exp %29 : vector<3x512xf32>
    %cst_18 = arith.constant 1.000000e+00 : f32
    %31 = vector.broadcast %cst_18 : f32 to vector<3x512xf32>
    %32 = arith.addf %31, %30 : vector<3x512xf32>
    %33 = arith.divf %31, %32 : vector<3x512xf32>
    %c1 = arith.constant 1 : index
    %c0_19 = arith.constant 0 : index
    %34 = vector.load %arg4[%c1, %c0_19] : memref<4x512xf32, #tpu.memory_space<vmem>>, vector<3x512xf32>
    tpu.vector_store %arg4[%c1, %c0_19], %33 {strides = array<i32>} : memref<4x512xf32, #tpu.memory_space<vmem>>, vector<3x512xf32>,
    return
  }
  func.func @transform_0(%arg0: i32) -> (i32, i32) {
    %c0_i32 = arith.constant 0 : i32
    %c0_i32_0 = arith.constant 0 : i32
    return %c0_i32, %arg0 : i32, i32
  }
  func.func @transform_1(%arg0: i32) -> (i32, i32) {
    %c0_i32 = arith.constant 0 : i32
    %c0_i32_0 = arith.constant 0 : i32
    return %c0_i32, %arg0 : i32, i32
  }
  func.func @transform_2(%arg0: i32) -> (i32, i32) {
    %c0_i32 = arith.constant 0 : i32
    %c0_i32_0 = arith.constant 0 : i32
    %c0_i32_1 = arith.constant 0 : i32
    return %c0_i32, %c0_i32_0 : i32, i32
  }
  func.func @transform_3(%arg0: i32) -> (i32, i32) {
    %c0_i32 = arith.constant 0 : i32
    %c0_i32_0 = arith.constant 0 : i32
    return %c0_i32, %arg0 : i32, i32
  }
}

</mosaic_0001>

<llo_original>
// kernel: ngp_forward.1
$region0: #{ngp_forward.1}
  #allocation0 [shape = 'u32[]', space=smem, size = 0x4, offset = 0x4, fixed_abs, tag = 'smem constant byte address 0x4 - core index']
  #allocation1 [shape = 'u32[144,128]{1,0:T(1,128)}', space=vmem, size = 0x12000, scoped, tag = 'internal scratch']
  %s0 = inlined_call_operand.vmem [shape: bf16[32,1024], index: 0, kind: input, shape index: {}]
  %s1 = inlined_call_operand.vmem [shape: bf16[16,1024], index: 1, kind: input, shape index: {}]
  %s2 = inlined_call_operand.vmem [shape: bf16[288,64], index: 2, kind: input, shape index: {}]
  %s3 = inlined_call_operand.vmem [shape: f32[4,1024], index: 3, kind: output, shape index: {}]
  %s4 = sld [smem:[#allocation0]]
  $region91: #{ngp_forward.1} parent=0
    _
  %s6 = ssub.s32 1, %s4
  %s7 = scalar_select 0, %s6, %s4
  $region1: #{ngp_forward.1} parent=0
    #allocation2 [shape = 'u8[65536]{0}', space=vmem, size = 0x10000, scoped, tag = 'input window, operand 0']
    #allocation3 [shape = 'u8[32768]{0}', space=vmem, size = 0x8000, scoped, tag = 'input window, operand 1']
    loop: start=0, step=1, limit=4
    $region2: #{ngp_forward.1} parent=1 // loop_pre_header
      _
    $region3: #{ngp_forward.1} parent=1 // loop_header
      %s9 = sphi 0, %s13
      %p10 = scmp.ge.s32.totalorder %s9, 4
      %s19 = sphi 0, %s21
      %s22 = sphi 0, %s19
      %s23 = sphi 0, %s22
      %s39 = sphi 0, %s23
      %s45 = sphi 0, %s47
      %s48 = sphi 0, %s45
      %s49 = sphi 0, %s48
      %s65 = sphi 0, %s49
      %s69 = sphi 0, %s69
      %s71 = sphi 0, %s69
      %s72 = sphi 0, %s71
      %s86 = sphi 0, %s72
      %s92 = sphi 0, %s94
      %s95 = sphi 0, %s92
      %s96 = sphi 0, %s95
      %s112 = sphi 0, %s96
    $region4: #{ngp_forward.1} parent=1 // loop_header_branch
      %12 = sbr.rel (%p10) target = $region8
    $region5: #{ngp_forward.1} parent=1 // loop_body
      %s14 = ssub.s32 %s9, 1
      %s15 = ssub.s32 %s9, 2
      %s16 = sadd.s32 %s9, 1
      %s17 = ssub.s32 %s9, %s16
      %p18 = scmp.eq.s32.totalorder %s17, 0
      %s20 = sadd.s32 %s19, 1
      %s21 = scalar_select %p18, %s19, %s20
      %p24 = pneg %p18
      %p25 = scmp.eq.s32.totalorder %s9, 1
      %p26 = por %p24, %p25
      %p27 = scmp.ne.s32.totalorder %s19, %s22
      %p28 = scmp.eq.s32.totalorder %s9, 0
      %p29 = por %p27, %p28
      %p30 = scmp.ne.s32.totalorder %s19, %s22
      %p31 = scmp.eq.s32.totalorder %s14, 1
      %p32 = por %p30, %p31
      %p33 = scmp.ne.s32.totalorder %s22, %s23
      %p34 = scmp.eq.s32.totalorder %s14, 0
      %p35 = por %p33, %p34
      %p36 = scmp.ne.s32.totalorder %s22, %s23
      %p37 = scmp.eq.s32.totalorder %s15, 1
      %p38 = por %p36, %p37
      %p40 = scmp.ne.s32.totalorder %s23, %s39
      %p41 = scmp.eq.s32.totalorder %s15, 0
      %p42 = por %p40, %p41
      %s43 = ssub.s32 %s9, %s16
      %p44 = scmp.eq.s32.totalorder %s43, 0
      %s46 = sadd.s32 %s45, 1
      %s47 = scalar_select %p44, %s45, %s46
      %p50 = pneg %p44
      %p51 = scmp.eq.s32.totalorder %s9, 1
      %p52 = por %p50, %p51
      %p53 = scmp.ne.s32.totalorder %s45, %s48
      %p54 = scmp.eq.s32.totalorder %s9, 0
      %p55 = por %p53, %p54
      %p56 = scmp.ne.s32.totalorder %s45, %s48
      %p57 = scmp.eq.s32.totalorder %s14, 1
      %p58 = por %p56, %p57
      %p59 = scmp.ne.s32.totalorder %s48, %s49
      %p60 = scmp.eq.s32.totalorder %s14, 0
      %p61 = por %p59, %p60
      %p62 = scmp.ne.s32.totalorder %s48, %s49
      %p63 = scmp.eq.s32.totalorder %s15, 1
      %p64 = por %p62, %p63
      %p66 = scmp.ne.s32.totalorder %s49, %s65
      %p67 = scmp.eq.s32.totalorder %s15, 0
      %p68 = por %p66, %p67
      %s70 = sadd.s32 %s69, 1
      %p73 = scmp.eq.s32.totalorder %s9, 1
      %p74 = scmp.ne.s32.totalorder %s69, %s71
      %p75 = scmp.eq.s32.totalorder %s9, 0
      %p76 = por %p74, %p75
      %p77 = scmp.ne.s32.totalorder %s69, %s71
      %p78 = scmp.eq.s32.totalorder %s14, 1
      %p79 = por %p77, %p78
      %p80 = scmp.ne.s32.totalorder %s71, %s72
      %p81 = scmp.eq.s32.totalorder %s14, 0
      %p82 = por %p80, %p81
      %p83 = scmp.ne.s32.totalorder %s71, %s72
      %p84 = scmp.eq.s32.totalorder %s15, 1
      %p85 = por %p83, %p84
      %p87 = scmp.ne.s32.totalorder %s72, %s86
      %p88 = scmp.eq.s32.totalorder %s15, 0
      %p89 = por %p87, %p88
      %s90 = ssub.s32 %s9, %s16
      %p91 = scmp.eq.s32.totalorder %s90, 0
      %s93 = sadd.s32 %s92, 1
      %s94 = scalar_select %p91, %s92, %s93
      %p97 = pneg %p91
      %p98 = scmp.eq.s32.totalorder %s9, 1
      %p99 = por %p97, %p98
      %p100 = scmp.ne.s32.totalorder %s92, %s95
      %p101 = scmp.eq.s32.totalorder %s9, 0
      %p102 = por %p100, %p101
      %p103 = scmp.ne.s32.totalorder %s92, %s95
      %p104 = scmp.eq.s32.totalorder %s14, 1
      %p105 = por %p103, %p104
      %p106 = scmp.ne.s32.totalorder %s95, %s96
      %p107 = scmp.eq.s32.totalorder %s14, 0
      %p108 = por %p106, %p107
      %p109 = scmp.ne.s32.totalorder %s95, %s96
      %p110 = scmp.eq.s32.totalorder %s15, 1
      %p111 = por %p109, %p110
      %p113 = scmp.ne.s32.totalorder %s96, %s112
      %p114 = scmp.eq.s32.totalorder %s15, 0
      %p115 = por %p113, %p114
      %p116 = scmp.le.s32.totalorder 1, %s9
      %p117 = scmp.lt.s32.totalorder %s9, 3
      %p118 = pnand %p116, %p117
      %p119 = pneg %p118
      // Predicated region
      $region9: #{ngp_forward.1} parent=5 // pred_check
        _
      $region10: #{ngp_forward.1} parent=5 // pred_check_branch
        %121 = sbr.rel (%p118) target = $region12
      $region11: #{ngp_forward.1} parent=5 // pred_region
        %s122 = ssub.s32 %s9, 1
        // Predicated region
        $region13: #{ngp_forward.1} parent=11 // pred_check
          %p123 = pneg %p82
        $region14: #{ngp_forward.1} parent=11 // pred_check_branch
          %125 = sbr.rel (%p123) target = $region16
        $region15: #{ngp_forward.1} parent=11 // pred_region
          _
        $region16: #{ngp_forward.1} parent=11 // pred_fallthru
          _
      $region12: #{ngp_forward.1} parent=5 // pred_fallthru
        _
      %p126 = scmp.lt.s32.totalorder %s9, 2
      // Predicated region
      $region17: #{ngp_forward.1} parent=5 // pred_check
        %p127 = pneg %p126
      $region18: #{ngp_forward.1} parent=5 // pred_check_branch
        %129 = sbr.rel (%p127) target = $region20
      $region19: #{ngp_forward.1} parent=5 // pred_region
        // Predicated region
        $region21: #{ngp_forward.1} parent=19 // pred_check
          %p130 = pneg %p29
        $region22: #{ngp_forward.1} parent=19 // pred_check_branch
          %132 = sbr.rel (%p130) target = $region24
        $region23: #{ngp_forward.1} parent=19 // pred_region
          %s133 = sand.u32 %s19, 1
          %s134 = sand.u32 %s19, 1
          %s135 = smul.addr %s134, 64
          %s136 = scalar_lea.vmem [#allocation2], %s135
          %s137 = smul.u32 4, %s9
          %s138 = smul.addr %s137, 4
          %s139 = scalar_lea.vmem %s0, %s138
          // Predicated region
          $region25: #{ngp_forward.1} parent=23 // pred_check
            _
          $region26: #{ngp_forward.1} parent=23 // pred_check_branch
            %141 = sbr.rel (0) target = $region28
          $region27: #{ngp_forward.1} parent=23 // pred_region
            // Predicated region
            $region29: #{ngp_forward.1} parent=27 // pred_check
              _
            $region30: #{ngp_forward.1} parent=27 // pred_check_branch
              %143 = sbr.rel (0) target = $region32
            $region31: #{ngp_forward.1} parent=27 // pred_region
              loop: start=0, step=1, limit=1
              $region33: #{ngp_forward.1} parent=31 // loop_pre_header
                _
              $region34: #{ngp_forward.1} parent=31 // loop_header
                %s145 = sphi 0, %s149
                %p146 = scmp.ge.s32.totalorder %s145, 1
                %s150 = sphi %s139, %s139
                %s151 = sphi %s136, %s136
              $region35: #{ngp_forward.1} parent=31 // loop_header_branch
                %148 = sbr.rel (%p146) target = $region39
              $region36: #{ngp_forward.1} parent=31 // loop_body
                %v152 = vld [vmem:[%s150] sm:$0xff]
                %153 = vst [vmem:[%s151] sm:$0xff] %v152
                %v154 = vld [vmem:[%s150 + $0x8] sm:$0xff]
                %155 = vst [vmem:[%s151 + $0x8] sm:$0xff] %v154
                %v156 = vld [vmem:[%s150 + $0x20] sm:$0xff]
                %157 = vst [vmem:[%s151 + $0x10] sm:$0xff] %v156
                %v158 = vld [vmem:[%s150 + $0x28] sm:$0xff]
                %159 = vst [vmem:[%s151 + $0x18] sm:$0xff] %v158
                %v160 = vld [vmem:[%s150 + $0x40] sm:$0xff]
                %161 = vst [vmem:[%s151 + $0x20] sm:$0xff] %v160
                %v162 = vld [vmem:[%s150 + $0x48] sm:$0xff]
                %163 = vst [vmem:[%s151 + $0x28] sm:$0xff] %v162
                %v164 = vld [vmem:[%s150 + $0x60] sm:$0xff]
                %165 = vst [vmem:[%s151 + $0x30] sm:$0xff] %v164
                %v166 = vld [vmem:[%s150 + $0x68] sm:$0xff]
                %167 = vst [vmem:[%s151 + $0x38] sm:$0xff] %v166
              $region37: #{ngp_forward.1} parent=31 // loop_footer
                %s149 = sadd.s32 1, %s145
              $region38: #{ngp_forward.1} parent=31 // loop_footer_branch
                %144 = sbr.rel target = $region34
              $region39: #{ngp_forward.1} parent=31 // loop_exit
                _
            $region32: #{ngp_forward.1} parent=27 // pred_fallthru
              _
            // Predicated region
            $region40: #{ngp_forward.1} parent=27 // pred_check
              _
            $region41: #{ngp_forward.1} parent=27 // pred_check_branch
              %169 = sbr.rel target = $region43
            $region42: #{ngp_forward.1} parent=27 // pred_region
              _
            $region43: #{ngp_forward.1} parent=27 // pred_fallthru
              _
          $region28: #{ngp_forward.1} parent=23 // pred_fallthru
            _
          %170 = vnop
        $region24: #{ngp_forward.1} parent=19 // pred_fallthru
          _
        // Predicated region
        $region44: #{ngp_forward.1} parent=19 // pred_check
          %p171 = pneg %p55
        $region45: #{ngp_forward.1} parent=19 // pred_check_branch
          %173 = sbr.rel (%p171) target = $region47
        $region46: #{ngp_forward.1} parent=19 // pred_region
          %s174 = sand.u32 %s45, 1
          %s175 = sand.u32 %s45, 1
          %s176 = smul.addr %s175, 32
          %s177 = scalar_lea.vmem [#allocation3], %s176
          %s178 = smul.u32 4, %s9
          %s179 = smul.addr %s178, 4
          %s180 = scalar_lea.vmem %s1, %s179
          // Predicated region
          $region48: #{ngp_forward.1} parent=46 // pred_check
            _
          $region49: #{ngp_forward.1} parent=46 // pred_check_branch
            %182 = sbr.rel (0) target = $region51
          $region50: #{ngp_forward.1} parent=46 // pred_region
            // Predicated region
            $region52: #{ngp_forward.1} parent=50 // pred_check
              _
            $region53: #{ngp_forward.1} parent=50 // pred_check_branch
              %184 = sbr.rel (0) target = $region55
            $region54: #{ngp_forward.1} parent=50 // pred_region
              loop: start=0, step=1, limit=1
              $region56: #{ngp_forward.1} parent=54 // loop_pre_header
                _
              $region57: #{ngp_forward.1} parent=54 // loop_header
                %s186 = sphi 0, %s190
                %p187 = scmp.ge.s32.totalorder %s186, 1
                %s191 = sphi %s180, %s180
                %s192 = sphi %s177, %s177
              $region58: #{ngp_forward.1} parent=54 // loop_header_branch
                %189 = sbr.rel (%p187) target = $region62
              $region59: #{ngp_forward.1} parent=54 // loop_body
                %v193 = vld [vmem:[%s191] sm:$0xff]
                %194 = vst [vmem:[%s192] sm:$0xff] %v193
                %v195 = vld [vmem:[%s191 + $0x8] sm:$0xff]
                %196 = vst [vmem:[%s192 + $0x8] sm:$0xff] %v195
                %v197 = vld [vmem:[%s191 + $0x20] sm:$0xff]
                %198 = vst [vmem:[%s192 + $0x10] sm:$0xff] %v197
                %v199 = vld [vmem:[%s191 + $0x28] sm:$0xff]
                %200 = vst [vmem:[%s192 + $0x18] sm:$0xff] %v199
              $region60: #{ngp_forward.1} parent=54 // loop_footer
                %s190 = sadd.s32 1, %s186
              $region61: #{ngp_forward.1} parent=54 // loop_footer_branch
                %185 = sbr.rel target = $region57
              $region62: #{ngp_forward.1} parent=54 // loop_exit
                _
            $region55: #{ngp_forward.1} parent=50 // pred_fallthru
              _
            // Predicated region
            $region63: #{ngp_forward.1} parent=50 // pred_check
              _
            $region64: #{ngp_forward.1} parent=50 // pred_check_branch
              %202 = sbr.rel target = $region66
            $region65: #{ngp_forward.1} parent=50 // pred_region
              _
            $region66: #{ngp_forward.1} parent=50 // pred_fallthru
              _
          $region51: #{ngp_forward.1} parent=46 // pred_fallthru
            _
          %203 = vnop
        $region47: #{ngp_forward.1} parent=19 // pred_fallthru
          _
      $region20: #{ngp_forward.1} parent=5 // pred_fallthru
        _
      %p204 = scmp.le.s32.totalorder 1, %s9
      %p205 = scmp.lt.s32.totalorder %s9, 3
      %p206 = pnand %p204, %p205
      %p207 = pneg %p206
      // Predicated region
      $region67: #{ngp_forward.1} parent=5 // pred_check
        _
      $region68: #{ngp_forward.1} parent=5 // pred_check_branch
        %209 = sbr.rel (%p206) target = $region70
      $region69: #{ngp_forward.1} parent=5 // pred_region
        %s210 = ssub.s32 %s9, 1
        %s211 = sand.u32 %s22, 1
        %s212 = sand.u32 %s22, 1
        %s213 = smul.addr %s212, 64
        %s214 = scalar_lea.vmem [#allocation2], %s213
        // Predicated region
        $region71: #{ngp_forward.1} parent=69 // pred_check
          %p215 = pneg %p35
        $region72: #{ngp_forward.1} parent=69 // pred_check_branch
          %217 = sbr.rel (%p215) target = $region74
        $region73: #{ngp_forward.1} parent=69 // pred_region
          _
        $region74: #{ngp_forward.1} parent=69 // pred_fallthru
          _
        %s218 = sand.u32 %s48, 1
        %s219 = sand.u32 %s48, 1
        %s220 = smul.addr %s219, 32
        %s221 = scalar_lea.vmem [#allocation3], %s220
        // Predicated region
        $region75: #{ngp_forward.1} parent=69 // pred_check
          %p222 = pneg %p61
        $region76: #{ngp_forward.1} parent=69 // pred_check_branch
          %224 = sbr.rel (%p222) target = $region78
        $region77: #{ngp_forward.1} parent=69 // pred_region
          _
        $region78: #{ngp_forward.1} parent=69 // pred_fallthru
          _
        %s225 = sand.u32 %s22, 1
        %s226 = sand.u32 %s22, 1
        %s227 = smul.addr %s226, 64
        %s228 = scalar_lea.vmem [#allocation2], %s227
        %p229 = pneg %p35
        %p230 = pneg %p32
        %s231 = sand.u32 %s48, 1
        %s232 = sand.u32 %s48, 1
        %s233 = smul.addr %s232, 32
        %s234 = scalar_lea.vmem [#allocation3], %s233
        %p235 = pneg %p61
        %p236 = pneg %p58
        %p237 = pneg %p82
        %p238 = pneg %p79
        %p239 = pneg %p108
        %p240 = pneg %p105
        %s241 = smul.u32 4, %s14
        %p242 = scmp.lt.s32.totalorder %s241, 7
        %s243 = scalar_select %p242, %s241, 7
        %s244 = smul.addr %s243, 4
        %s245 = scalar_lea.vmem %s3, %s244
        %s246 = smul.u32 4, %s14
        %s247 = smul.u32 4, %s14
        %s248 = smul.u32 4, %s14
        %p249 = scmp.lt.s32.totalorder %s248, 7
        %s250 = scalar_select %p249, %s248, 7
        %s251 = smul.addr %s250, 4
        %s252 = scalar_lea.vmem %s3, %s251
        %s253 = smul.u32 4, %s14
        %v255 = vld [vmem:[%s214] sm:$0xff]
        %v256 = vld [vmem:[%s214 + $0x8] sm:$0xff]
        %v257 = vld [vmem:[%s214 + $0x10] sm:$0xff]
        %v258 = vld [vmem:[%s214 + $0x18] sm:$0xff]
        %v259 = vld [vmem:[%s214 + $0x20] sm:$0xff]
        %v260 = vld [vmem:[%s214 + $0x28] sm:$0xff]
        %v261 = vld [vmem:[%s214 + $0x30] sm:$0xff]
        %v262 = vld [vmem:[%s214 + $0x38] sm:$0xff]
        %v263 = vld [vmem:[%s221] sm:$0xff]
        %v264 = vld [vmem:[%s221 + $0x8] sm:$0xff]
        %v265 = vld [vmem:[%s221 + $0x10] sm:$0xff]
        %v266 = vld [vmem:[%s221 + $0x18] sm:$0xff]
        %v275 = vunpack.c.l.b16 %v255
        %v276 = vunpack.c.h.b16 %v255
        %v277 = vunpack.c.l.b16 %v256
        %v278 = vunpack.c.h.b16 %v256
        %v279 = vunpack.c.l.b16 %v257
        %v280 = vunpack.c.h.b16 %v257
        %v281 = vunpack.c.l.b16 %v258
        %v282 = vunpack.c.h.b16 %v258
        %v283 = vunpack.c.l.b16 %v259
        %v284 = vunpack.c.h.b16 %v259
        %v285 = vunpack.c.l.b16 %v260
        %v286 = vunpack.c.h.b16 %v260
        %v287 = vunpack.c.l.b16 %v261
        %v288 = vunpack.c.h.b16 %v261
        %v289 = vunpack.c.l.b16 %v262
        %v290 = vunpack.c.h.b16 %v262
        %v291 = vpack.c.b16 %v279, %v275
        %v292 = vpack.c.b16 %v280, %v276
        %v293 = vpack.c.b16 %v281, %v277
        %v294 = vpack.c.b16 %v282, %v278
        %v295 = vpack.c.b16 %v287, %v283
        %v296 = vpack.c.b16 %v288, %v284
        %v297 = vpack.c.b16 %v289, %v285
        %v298 = vpack.c.b16 %v290, %v286
        %v311 = vunpack.c.l.b16 %v263
        %v312 = vunpack.c.h.b16 %v263
        %v313 = vunpack.c.l.b16 %v264
        %v314 = vunpack.c.h.b16 %v264
        %v315 = vunpack.c.l.b16 %v265
        %v316 = vunpack.c.h.b16 %v265
        %v317 = vunpack.c.l.b16 %v266
        %v318 = vunpack.c.h.b16 %v266
        %v319 = vpack.c.b16 %v315, %v311
        %v320 = vpack.c.b16 %v316, %v312
        %v321 = vpack.c.b16 %v317, %v313
        %v322 = vpack.c.b16 %v318, %v314
        %v327 = vld [vmem:[%s2] sm:$0xf]
        %v328 = vld [vmem:[%s2 + $0x4] sm:$0xf]
        %v329 = vld [vmem:[%s2 + $0x8] sm:$0xf]
        %v330 = vld [vmem:[%s2 + $0xc] sm:$0xf]
        %v331 = vld [vmem:[%s2 + $0x10] sm:$0xf]
        %v332 = vld [vmem:[%s2 + $0x14] sm:$0xf]
        %v333 = vld [vmem:[%s2 + $0x18] sm:$0xf]
        %v334 = vld [vmem:[%s2 + $0x1c] sm:$0xf]
        %v335 = vld [vmem:[%s2 + $0x20] sm:$0xf]
        %v336 = vld [vmem:[%s2 + $0x24] sm:$0xf]
        %v337 = vld [vmem:[%s2 + $0x28] sm:$0xf]
        %v338 = vld [vmem:[%s2 + $0x2c] sm:$0xf]
        %v339 = vld [vmem:[%s2 + $0x30] sm:$0xf]
        %v340 = vld [vmem:[%s2 + $0x34] sm:$0xf]
        %v341 = vld [vmem:[%s2 + $0x38] sm:$0xf]
        %v342 = vld [vmem:[%s2 + $0x3c] sm:$0xf]
        %v343 = vld [vmem:[%s2 + $0x40] sm:$0xf]
        %v344 = vld [vmem:[%s2 + $0x44] sm:$0xf]
        %v345 = vld [vmem:[%s2 + $0x48] sm:$0xf]
        %v346 = vld [vmem:[%s2 + $0x4c] sm:$0xf]
        %v347 = vld [vmem:[%s2 + $0x50] sm:$0xf]
        %v348 = vld [vmem:[%s2 + $0x54] sm:$0xf]
        %v349 = vld [vmem:[%s2 + $0x58] sm:$0xf]
        %v350 = vld [vmem:[%s2 + $0x5c] sm:$0xf]
        %v351 = vld [vmem:[%s2 + $0x60] sm:$0xf]
        %v352 = vld [vmem:[%s2 + $0x64] sm:$0xf]
        %v353 = vld [vmem:[%s2 + $0x68] sm:$0xf]
        %v354 = vld [vmem:[%s2 + $0x6c] sm:$0xf]
        %v355 = vld [vmem:[%s2 + $0x70] sm:$0xf]
        %v356 = vld [vmem:[%s2 + $0x74] sm:$0xf]
        %v357 = vld [vmem:[%s2 + $0x78] sm:$0xf]
        %v358 = vld [vmem:[%s2 + $0x7c] sm:$0xf]
        %v359 = vld [vmem:[%s2 + $0x80] sm:$0xf]
        %v360 = vld [vmem:[%s2 + $0x84] sm:$0xf]
        %v361 = vld [vmem:[%s2 + $0x88] sm:$0x3]
        %v378 = vunpack.c.l.b16 %v327
        %v379 = vunpack.c.l.b16 %v328
        %v380 = vunpack.c.l.b16 %v329
        %v381 = vunpack.c.l.b16 %v330
        %v382 = vunpack.c.l.b16 %v331
        %v383 = vunpack.c.l.b16 %v332
        %v384 = vunpack.c.l.b16 %v333
        %v385 = vunpack.c.l.b16 %v334
        %v386 = vunpack.c.l.b16 %v335
        %v387 = vunpack.c.l.b16 %v336
        %v388 = vunpack.c.l.b16 %v337
        %v389 = vunpack.c.l.b16 %v338
        %v390 = vunpack.c.l.b16 %v339
        %v391 = vunpack.c.l.b16 %v340
        %v392 = vunpack.c.l.b16 %v341
        %v393 = vunpack.c.l.b16 %v342
        %v394 = vpack.c.b16 %v379, %v378
        %v395 = vpack.c.b16 %v381, %v380
        %v396 = vpack.c.b16 %v383, %v382
        %v397 = vpack.c.b16 %v385, %v384
        %v398 = vpack.c.b16 %v387, %v386
        %v399 = vpack.c.b16 %v389, %v388
        %v400 = vpack.c.b16 %v391, %v390
        %v401 = vpack.c.b16 %v393, %v392
        %vm402 = vcmask 392192
        %v404 = vsel %vm402, %v394, 0
        %v407 = vsel %vm402, %v395, 0
        %v410 = vsel %vm402, %v396, 0
        %v413 = vsel %vm402, %v397, 0
        %v416 = vsel %vm402, %v398, 0
        %v419 = vsel %vm402, %v399, 0
        %v422 = vsel %vm402, %v400, 0
        %v425 = vsel %vm402, %v401, 0
        %427 = vmatprep.subr.bf16.mxu0 %v292
        %428 = vmatpush1.bf16.msra.mxu0 %v291
        %429 = vmatprep.subr.bf16.mxu0 %v296
        %430 = vmatpush1.bf16.msra.mxu0 %v295
        %431 = vmatprep.subr.bf16.mxu0 %v320
        %432 = vmatpush1.bf16.msra.mxu0 %v319
        %433 = vmatprep.subr.bf16.mxu0 0
        %434 = vmatpush1.bf16.msra.mxu0 0
        %435 = vmatprep.subr.bf16.mxu0 0
        %436 = vmatpush1.bf16.msra.mxu0 0
        %437 = vmatprep.subr.bf16.mxu0 0
        %438 = vmatpush1.bf16.msra.mxu0 0
        %439 = vmatprep.subr.bf16.mxu0 0
        %440 = vmatpush1.bf16.msra.mxu0 0
        %441 = vmatprep.subr.bf16.mxu0 0
        %442 = vmatpush1.bf16.msra.mxu0 0
        %443 = vmatprep.subr.bf16.mxu0 0
        %444 = vmatpush1.bf16.msra.mxu0 0
        %445 = vmatprep.subr.bf16.mxu0 0
        %446 = vmatpush1.bf16.msra.mxu0 0
        %447 = vmatprep.subr.bf16.mxu0 0
        %448 = vmatpush1.bf16.msra.mxu0 0
        %449 = vmatprep.subr.bf16.mxu0 0
        %450 = vmatpush1.bf16.msra.mxu0 0
        %451 = vmatprep.subr.bf16.mxu0 0
        %452 = vmatpush1.bf16.msra.mxu0 0
        %453 = vmatprep.subr.bf16.mxu0 0
        %454 = vmatpush1.bf16.msra.mxu0 0
        %455 = vmatprep.subr.bf16.mxu0 0
        %456 = vmatpush1.bf16.msra.mxu0 0
        %457 = vmatprep.subr.bf16.mxu0 0
        %458 = vmatpush1.bf16.msra.mxu0 0
        %459 = vmatprep.mubr.bf16.mxu0 0
        %460 = vmatmul.mubr.bf16.gmra.mrb[0].mxu0 %v404
        %v461 = vpop.f32.mrb[0].mxu0
        %v462 = vadd.f32 0.0, %v461
        %v463 = vpop.f32.mrb[0].mxu0
        %v464 = vadd.f32 0.0, %v463
        %v465 = vpop.f32.mrb[0].mxu0
        %v466 = vadd.f32 0.0, %v465
        %v467 = vpop.f32.mrb[0].mxu0
        %v468 = vadd.f32 0.0, %v467
        %469 = vmatprep.mubr.bf16.mxu0 0
        %470 = vmatmul.mubr.bf16.gmra.mrb[0].mxu0 %v407
        %v471 = vpop.f32.mrb[0].mxu0
        %v472 = vadd.f32 0.0, %v471
        %v473 = vpop.f32.mrb[0].mxu0
        %v474 = vadd.f32 0.0, %v473
        %v475 = vpop.f32.mrb[0].mxu0
        %v476 = vadd.f32 0.0, %v475
        %v477 = vpop.f32.mrb[0].mxu0
        %v478 = vadd.f32 0.0, %v477
        %479 = vmatprep.mubr.bf16.mxu0 0
        %480 = vmatmul.mubr.bf16.gmra.mrb[0].mxu0 %v410
        %v481 = vpop.f32.mrb[0].mxu0
        %v482 = vadd.f32 0.0, %v481
        %v483 = vpop.f32.mrb[0].mxu0
        %v484 = vadd.f32 0.0, %v483
        %v485 = vpop.f32.mrb[0].mxu0
        %v486 = vadd.f32 0.0, %v485
        %v487 = vpop.f32.mrb[0].mxu0
        %v488 = vadd.f32 0.0, %v487
        %489 = vmatprep.mubr.bf16.mxu0 0
        %490 = vmatmul.mubr.bf16.gmra.mrb[0].mxu0 %v413
        %v491 = vpop.f32.mrb[0].mxu0
        %v492 = vadd.f32 0.0, %v491
        %v493 = vpop.f32.mrb[0].mxu0
        %v494 = vadd.f32 0.0, %v493
        %v495 = vpop.f32.mrb[0].mxu0
        %v496 = vadd.f32 0.0, %v495
        %v497 = vpop.f32.mrb[0].mxu0
        %v498 = vadd.f32 0.0, %v497
        %499 = vmatprep.mubr.bf16.mxu0 0
        %500 = vmatmul.mubr.bf16.gmra.mrb[0].mxu0 %v416
        %v501 = vpop.f32.mrb[0].mxu0
        %v502 = vadd.f32 0.0, %v501
        %v503 = vpop.f32.mrb[0].mxu0
        %v504 = vadd.f32 0.0, %v503
        %v505 = vpop.f32.mrb[0].mxu0
        %v506 = vadd.f32 0.0, %v505
        %v507 = vpop.f32.mrb[0].mxu0
        %v508 = vadd.f32 0.0, %v507
        %509 = vmatprep.mubr.bf16.mxu0 0
        %510 = vmatmul.mubr.bf16.gmra.mrb[0].mxu0 %v419
        %v511 = vpop.f32.mrb[0].mxu0
        %v512 = vadd.f32 0.0, %v511
        %v513 = vpop.f32.mrb[0].mxu0
        %v514 = vadd.f32 0.0, %v513
        %v515 = vpop.f32.mrb[0].mxu0
        %v516 = vadd.f32 0.0, %v515
        %v517 = vpop.f32.mrb[0].mxu0
        %v518 = vadd.f32 0.0, %v517
        %519 = vmatprep.mubr.bf16.mxu0 0
        %520 = vmatmul.mubr.bf16.gmra.mrb[0].mxu0 %v422
        %v521 = vpop.f32.mrb[0].mxu0
        %v522 = vadd.f32 0.0, %v521
        %v523 = vpop.f32.mrb[0].mxu0
        %v524 = vadd.f32 0.0, %v523
        %v525 = vpop.f32.mrb[0].mxu0
        %v526 = vadd.f32 0.0, %v525
        %v527 = vpop.f32.mrb[0].mxu0
        %v528 = vadd.f32 0.0, %v527
        %529 = vmatprep.mubr.bf16.mxu0 0
        %530 = vmatmul.mubr.bf16.gmra.mrb[0].mxu0 %v425
        %v531 = vpop.f32.mrb[0].mxu0
        %v532 = vadd.f32 0.0, %v531
        %v533 = vpop.f32.mrb[0].mxu0
        %v534 = vadd.f32 0.0, %v533
        %v535 = vpop.f32.mrb[0].mxu0
        %v536 = vadd.f32 0.0, %v535
        %v537 = vpop.f32.mrb[0].mxu0
        %v538 = vadd.f32 0.0, %v537
        %539 = vdwg.mxu0
        %540 = vmatprep.subr.bf16.mxu0 %v294
        %541 = vmatpush1.bf16.msra.mxu0 %v293
        %542 = vmatprep.subr.bf16.mxu0 %v298
        %543 = vmatpush1.bf16.msra.mxu0 %v297
        %544 = vmatprep.subr.bf16.mxu0 %v322
        %545 = vmatpush1.bf16.msra.mxu0 %v321
        %546 = vmatprep.subr.bf16.mxu0 0
        %547 = vmatpush1.bf16.msra.mxu0 0
        %548 = vmatprep.subr.bf16.mxu0 0
        %549 = vmatpush1.bf16.msra.mxu0 0
        %550 = vmatprep.subr.bf16.mxu0 0
        %551 = vmatpush1.bf16.msra.mxu0 0
        %552 = vmatprep.subr.bf16.mxu0 0
        %553 = vmatpush1.bf16.msra.mxu0 0
        %554 = vmatprep.subr.bf16.mxu0 0
        %555 = vmatpush1.bf16.msra.mxu0 0
        %556 = vmatprep.subr.bf16.mxu0 0
        %557 = vmatpush1.bf16.msra.mxu0 0
        %558 = vmatprep.subr.bf16.mxu0 0
        %559 = vmatpush1.bf16.msra.mxu0 0
        %560 = vmatprep.subr.bf16.mxu0 0
        %561 = vmatpush1.bf16.msra.mxu0 0
        %562 = vmatprep.subr.bf16.mxu0 0
        %563 = vmatpush1.bf16.msra.mxu0 0
        %564 = vmatprep.subr.bf16.mxu0 0
        %565 = vmatpush1.bf16.msra.mxu0 0
        %566 = vmatprep.subr.bf16.mxu0 0
        %567 = vmatpush1.bf16.msra.mxu0 0
        %568 = vmatprep.subr.bf16.mxu0 0
        %569 = vmatpush1.bf16.msra.mxu0 0
        %570 = vmatprep.subr.bf16.mxu0 0
        %571 = vmatpush1.bf16.msra.mxu0 0
        %572 = vmatprep.mubr.bf16.mxu0 0
        %573 = vmatmul.mubr.bf16.gmra.mrb[0].mxu0 %v404
        %v574 = vpop.f32.mrb[0].mxu0
        %v575 = vadd.f32 0.0, %v574
        %v576 = vpop.f32.mrb[0].mxu0
        %v577 = vadd.f32 0.0, %v576
        %v578 = vpop.f32.mrb[0].mxu0
        %v579 = vadd.f32 0.0, %v578
        %v580 = vpop.f32.mrb[0].mxu0
        %v581 = vadd.f32 0.0, %v580
        %582 = vmatprep.mubr.bf16.mxu0 0
        %583 = vmatmul.mubr.bf16.gmra.mrb[0].mxu0 %v407
        %v584 = vpop.f32.mrb[0].mxu0
        %v585 = vadd.f32 0.0, %v584
        %v586 = vpop.f32.mrb[0].mxu0
        %v587 = vadd.f32 0.0, %v586
        %v588 = vpop.f32.mrb[0].mxu0
        %v589 = vadd.f32 0.0, %v588
        %v590 = vpop.f32.mrb[0].mxu0
        %v591 = vadd.f32 0.0, %v590
        %592 = vmatprep.mubr.bf16.mxu0 0
        %593 = vmatmul.mubr.bf16.gmra.mrb[0].mxu0 %v410
        %v594 = vpop.f32.mrb[0].mxu0
        %v595 = vadd.f32 0.0, %v594
        %v596 = vpop.f32.mrb[0].mxu0
        %v597 = vadd.f32 0.0, %v596
        %v598 = vpop.f32.mrb[0].mxu0
        %v599 = vadd.f32 0.0, %v598
        %v600 = vpop.f32.mrb[0].mxu0
        %v601 = vadd.f32 0.0, %v600
        %602 = vmatprep.mubr.bf16.mxu0 0
        %603 = vmatmul.mubr.bf16.gmra.mrb[0].mxu0 %v413
        %v604 = vpop.f32.mrb[0].mxu0
        %v605 = vadd.f32 0.0, %v604
        %v606 = vpop.f32.mrb[0].mxu0
        %v607 = vadd.f32 0.0, %v606
        %v608 = vpop.f32.mrb[0].mxu0
        %v609 = vadd.f32 0.0, %v608
        %v610 = vpop.f32.mrb[0].mxu0
        %v611 = vadd.f32 0.0, %v610
        %612 = vmatprep.mubr.bf16.mxu0 0
        %613 = vmatmul.mubr.bf16.gmra.mrb[0].mxu0 %v416
        %v614 = vpop.f32.mrb[0].mxu0
        %v615 = vadd.f32 0.0, %v614
        %v616 = vpop.f32.mrb[0].mxu0
        %v617 = vadd.f32 0.0, %v616
        %v618 = vpop.f32.mrb[0].mxu0
        %v619 = vadd.f32 0.0, %v618
        %v620 = vpop.f32.mrb[0].mxu0
        %v621 = vadd.f32 0.0, %v620
        %622 = vmatprep.mubr.bf16.mxu0 0
        %623 = vmatmul.mubr.bf16.gmra.mrb[0].mxu0 %v419
        %v624 = vpop.f32.mrb[0].mxu0
        %v625 = vadd.f32 0.0, %v624
        %v626 = vpop.f32.mrb[0].mxu0
        %v627 = vadd.f32 0.0, %v626
        %v628 = vpop.f32.mrb[0].mxu0
        %v629 = vadd.f32 0.0, %v628
        %v630 = vpop.f32.mrb[0].mxu0
        %v631 = vadd.f32 0.0, %v630
        %632 = vmatprep.mubr.bf16.mxu0 0
        %633 = vmatmul.mubr.bf16.gmra.mrb[0].mxu0 %v422
        %v634 = vpop.f32.mrb[0].mxu0
        %v635 = vadd.f32 0.0, %v634
        %v636 = vpop.f32.mrb[0].mxu0
        %v637 = vadd.f32 0.0, %v636
        %v638 = vpop.f32.mrb[0].mxu0
        %v639 = vadd.f32 0.0, %v638
        %v640 = vpop.f32.mrb[0].mxu0
        %v641 = vadd.f32 0.0, %v640
        %642 = vmatprep.mubr.bf16.mxu0 0
        %643 = vmatmul.mubr.bf16.gmra.mrb[0].mxu0 %v425
        %v644 = vpop.f32.mrb[0].mxu0
        %v645 = vadd.f32 0.0, %v644
        %v646 = vpop.f32.mrb[0].mxu0
        %v647 = vadd.f32 0.0, %v646
        %v648 = vpop.f32.mrb[0].mxu0
        %v649 = vadd.f32 0.0, %v648
        %v650 = vpop.f32.mrb[0].mxu0
        %v651 = vadd.f32 0.0, %v650
        %652 = vdwg.mxu0
        %v653 = vmax.f32 %v462, 0.0
        %v654 = vmax.f32 %v464, 0.0
        %v655 = vmax.f32 %v575, 0.0
        %v656 = vmax.f32 %v577, 0.0
        %v657 = vmax.f32 %v466, 0.0
        %v658 = vmax.f32 %v468, 0.0
        %v659 = vmax.f32 %v579, 0.0
        %v660 = vmax.f32 %v581, 0.0
        %v661 = vmax.f32 %v472, 0.0
        %v662 = vmax.f32 %v474, 0.0
        %v663 = vmax.f32 %v585, 0.0
        %v664 = vmax.f32 %v587, 0.0
        %v665 = vmax.f32 %v476, 0.0
        %v666 = vmax.f32 %v478, 0.0
        %v667 = vmax.f32 %v589, 0.0
        %v668 = vmax.f32 %v591, 0.0
        %v669 = vmax.f32 %v482, 0.0
        %v670 = vmax.f32 %v484, 0.0
        %v671 = vmax.f32 %v595, 0.0
        %v672 = vmax.f32 %v597, 0.0
        %v673 = vmax.f32 %v486, 0.0
        %v674 = vmax.f32 %v488, 0.0
        %v675 = vmax.f32 %v599, 0.0
        %v676 = vmax.f32 %v601, 0.0
        %v677 = vmax.f32 %v492, 0.0
        %v678 = vmax.f32 %v494, 0.0
        %v679 = vmax.f32 %v605, 0.0
        %v680 = vmax.f32 %v607, 0.0
        %v681 = vmax.f32 %v496, 0.0
        %v682 = vmax.f32 %v498, 0.0
        %v683 = vmax.f32 %v609, 0.0
        %v684 = vmax.f32 %v611, 0.0
        %v685 = vpack.c.bf16 %v657, %v653
        %v686 = vpack.c.bf16 %v658, %v654
        %v687 = vpack.c.bf16 %v659, %v655
        %v688 = vpack.c.bf16 %v660, %v656
        %v689 = vpack.c.bf16 %v665, %v661
        %v690 = vpack.c.bf16 %v666, %v662
        %v691 = vpack.c.bf16 %v667, %v663
        %v692 = vpack.c.bf16 %v668, %v664
        %v693 = vpack.c.bf16 %v673, %v669
        %v694 = vpack.c.bf16 %v674, %v670
        %v695 = vpack.c.bf16 %v675, %v671
        %v696 = vpack.c.bf16 %v676, %v672
        %v697 = vpack.c.bf16 %v681, %v677
        %v698 = vpack.c.bf16 %v682, %v678
        %v699 = vpack.c.bf16 %v683, %v679
        %v700 = vpack.c.bf16 %v684, %v680
        %v703 = vunpack.c.l.b16 %v343
        %v704 = vunpack.c.l.b16 %v344
        %v705 = vpack.c.b16 %v704, %v703
        %vm706 = vcmask 523264
        %v708 = vsel %vm706, %v705, 0
        %710 = vmatprep.subr.bf16.mxu0 %v686
        %711 = vmatpush1.bf16.msra.mxu0 %v685
        %712 = vmatprep.subr.bf16.mxu0 %v690
        %713 = vmatpush1.bf16.msra.mxu0 %v689
        %714 = vmatprep.subr.bf16.mxu0 %v694
        %715 = vmatpush1.bf16.msra.mxu0 %v693
        %716 = vmatprep.subr.bf16.mxu0 %v698
        %717 = vmatpush1.bf16.msra.mxu0 %v697
        %718 = vmatprep.subr.bf16.mxu0 0
        %719 = vmatpush1.bf16.msra.mxu0 0
        %720 = vmatprep.subr.bf16.mxu0 0
        %721 = vmatpush1.bf16.msra.mxu0 0
        %722 = vmatprep.subr.bf16.mxu0 0
        %723 = vmatpush1.bf16.msra.mxu0 0
        %724 = vmatprep.subr.bf16.mxu0 0
        %725 = vmatpush1.bf16.msra.mxu0 0
        %726 = vmatprep.subr.bf16.mxu0 0
        %727 = vmatpush1.bf16.msra.mxu0 0
        %728 = vmatprep.subr.bf16.mxu0 0
        %729 = vmatpush1.bf16.msra.mxu0 0
        %730 = vmatprep.subr.bf16.mxu0 0
        %731 = vmatpush1.bf16.msra.mxu0 0
        %732 = vmatprep.subr.bf16.mxu0 0
        %733 = vmatpush1.bf16.msra.mxu0 0
        %734 = vmatprep.subr.bf16.mxu0 0
        %735 = vmatpush1.bf16.msra.mxu0 0
        %736 = vmatprep.subr.bf16.mxu0 0
        %737 = vmatpush1.bf16.msra.mxu0 0
        %738 = vmatprep.subr.bf16.mxu0 0
        %739 = vmatpush1.bf16.msra.mxu0 0
        %740 = vmatprep.subr.bf16.mxu0 0
        %741 = vmatpush1.bf16.msra.mxu0 0
        %742 = vmatprep.mubr.bf16.mxu0 0
        %743 = vmatmul.mubr.bf16.gmra.mrb[0].mxu0 %v708
        %v744 = vpop.f32.mrb[0].mxu0
        %v745 = vadd.f32 0.0, %v744
        %v746 = vpop.f32.mrb[0].mxu0
        %v747 = vadd.f32 0.0, %v746
        %v748 = vpop.f32.mrb[0].mxu0
        %v749 = vadd.f32 0.0, %v748
        %v750 = vpop.f32.mrb[0].mxu0
        %v751 = vadd.f32 0.0, %v750
        %752 = vdwg.mxu0
        %753 = vmatprep.subr.bf16.mxu0 %v688
        %754 = vmatpush1.bf16.msra.mxu0 %v687
        %755 = vmatprep.subr.bf16.mxu0 %v692
        %756 = vmatpush1.bf16.msra.mxu0 %v691
        %757 = vmatprep.subr.bf16.mxu0 %v696
        %758 = vmatpush1.bf16.msra.mxu0 %v695
        %759 = vmatprep.subr.bf16.mxu0 %v700
        %760 = vmatpush1.bf16.msra.mxu0 %v699
        %761 = vmatprep.subr.bf16.mxu0 0
        %762 = vmatpush1.bf16.msra.mxu0 0
        %763 = vmatprep.subr.bf16.mxu0 0
        %764 = vmatpush1.bf16.msra.mxu0 0
        %765 = vmatprep.subr.bf16.mxu0 0
        %766 = vmatpush1.bf16.msra.mxu0 0
        %767 = vmatprep.subr.bf16.mxu0 0
        %768 = vmatpush1.bf16.msra.mxu0 0
        %769 = vmatprep.subr.bf16.mxu0 0
        %770 = vmatpush1.bf16.msra.mxu0 0
        %771 = vmatprep.subr.bf16.mxu0 0
        %772 = vmatpush1.bf16.msra.mxu0 0
        %773 = vmatprep.subr.bf16.mxu0 0
        %774 = vmatpush1.bf16.msra.mxu0 0
        %775 = vmatprep.subr.bf16.mxu0 0
        %776 = vmatpush1.bf16.msra.mxu0 0
        %777 = vmatprep.subr.bf16.mxu0 0
        %778 = vmatpush1.bf16.msra.mxu0 0
        %779 = vmatprep.subr.bf16.mxu0 0
        %780 = vmatpush1.bf16.msra.mxu0 0
        %781 = vmatprep.subr.bf16.mxu0 0
        %782 = vmatpush1.bf16.msra.mxu0 0
        %783 = vmatprep.subr.bf16.mxu0 0
        %784 = vmatpush1.bf16.msra.mxu0 0
        %785 = vmatprep.mubr.bf16.mxu0 0
        %786 = vmatmul.mubr.bf16.gmra.mrb[0].mxu0 %v708
        %v787 = vpop.f32.mrb[0].mxu0
        %v788 = vadd.f32 0.0, %v787
        %v789 = vpop.f32.mrb[0].mxu0
        %v790 = vadd.f32 0.0, %v789
        %v791 = vpop.f32.mrb[0].mxu0
        %v792 = vadd.f32 0.0, %v791
        %v793 = vpop.f32.mrb[0].mxu0
        %v794 = vadd.f32 0.0, %v793
        %795 = vdwg.mxu0
        %v796 = vmul.f32 %v745, 1.442695
        %v797 = vpow.pop %v796
        %v798 = vmul.f32 %v747, 1.442695
        %v799 = vpow.pop %v798
        %v800 = vmul.f32 %v788, 1.442695
        %v801 = vpow.pop %v800
        %v802 = vmul.f32 %v790, 1.442695
        %v803 = vpow.pop %v802
        %v804 = vpack.c.bf16 %v749, %v745
        %v805 = vpack.c.bf16 %v751, %v747
        %v806 = vpack.c.bf16 %v792, %v788
        %v807 = vpack.c.bf16 %v794, %v790
        %v816 = vunpack.c.l.b16 %v345
        %v817 = vunpack.c.l.b16 %v346
        %v818 = vunpack.c.l.b16 %v347
        %v819 = vunpack.c.l.b16 %v348
        %v820 = vunpack.c.l.b16 %v349
        %v821 = vunpack.c.l.b16 %v350
        %v822 = vunpack.c.l.b16 %v351
        %v823 = vunpack.c.l.b16 %v352
        %v824 = vpack.c.b16 %v817, %v816
        %v825 = vpack.c.b16 %v819, %v818
        %v826 = vpack.c.b16 %v821, %v820
        %v827 = vpack.c.b16 %v823, %v822
        %vm828 = vcmask 130048
        %v830 = vsel %vm828, %v824, 0
        %v833 = vsel %vm828, %v825, 0
        %v836 = vsel %vm828, %v826, 0
        %v839 = vsel %vm828, %v827, 0
        %841 = vmatprep.subr.bf16.mxu0 %v805
        %842 = vmatpush1.bf16.msra.mxu0 %v804
        %843 = vmatprep.subr.bf16.mxu0 0
        %844 = vmatpush1.bf16.msra.mxu0 0
        %845 = vmatprep.subr.bf16.mxu0 0
        %846 = vmatpush1.bf16.msra.mxu0 0
        %847 = vmatprep.subr.bf16.mxu0 0
        %848 = vmatpush1.bf16.msra.mxu0 0
        %849 = vmatprep.subr.bf16.mxu0 0
        %850 = vmatpush1.bf16.msra.mxu0 0
        %851 = vmatprep.subr.bf16.mxu0 0
        %852 = vmatpush1.bf16.msra.mxu0 0
        %853 = vmatprep.subr.bf16.mxu0 0
        %854 = vmatpush1.bf16.msra.mxu0 0
        %855 = vmatprep.subr.bf16.mxu0 0
        %856 = vmatpush1.bf16.msra.mxu0 0
        %857 = vmatprep.subr.bf16.mxu0 0
        %858 = vmatpush1.bf16.msra.mxu0 0
        %859 = vmatprep.subr.bf16.mxu0 0
        %860 = vmatpush1.bf16.msra.mxu0 0
        %861 = vmatprep.subr.bf16.mxu0 0
        %862 = vmatpush1.bf16.msra.mxu0 0
        %863 = vmatprep.subr.bf16.mxu0 0
        %864 = vmatpush1.bf16.msra.mxu0 0
        %865 = vmatprep.subr.bf16.mxu0 0
        %866 = vmatpush1.bf16.msra.mxu0 0
        %867 = vmatprep.subr.bf16.mxu0 0
        %868 = vmatpush1.bf16.msra.mxu0 0
        %869 = vmatprep.subr.bf16.mxu0 0
        %870 = vmatpush1.bf16.msra.mxu0 0
        %871 = vmatprep.subr.bf16.mxu0 0
        %872 = vmatpush1.bf16.msra.mxu0 0
        %873 = vmatprep.mubr.bf16.mxu0 0
        %874 = vmatmul.mubr.bf16.gmra.mrb[0].mxu0 %v830
        %v875 = vpop.f32.mrb[0].mxu0
        %v876 = vadd.f32 0.0, %v875
        %v877 = vpop.f32.mrb[0].mxu0
        %v878 = vadd.f32 0.0, %v877
        %v879 = vpop.f32.mrb[0].mxu0
        %v880 = vadd.f32 0.0, %v879
        %v881 = vpop.f32.mrb[0].mxu0
        %v882 = vadd.f32 0.0, %v881
        %883 = vmatprep.mubr.bf16.mxu0 0
        %884 = vmatmul.mubr.bf16.gmra.mrb[0].mxu0 %v833
        %v885 = vpop.f32.mrb[0].mxu0
        %v886 = vadd.f32 0.0, %v885
        %v887 = vpop.f32.mrb[0].mxu0
        %v888 = vadd.f32 0.0, %v887
        %v889 = vpop.f32.mrb[0].mxu0
        %v890 = vadd.f32 0.0, %v889
        %v891 = vpop.f32.mrb[0].mxu0
        %v892 = vadd.f32 0.0, %v891
        %893 = vmatprep.mubr.bf16.mxu0 0
        %894 = vmatmul.mubr.bf16.gmra.mrb[0].mxu0 %v836
        %v895 = vpop.f32.mrb[0].mxu0
        %v896 = vadd.f32 0.0, %v895
        %v897 = vpop.f32.mrb[0].mxu0
        %v898 = vadd.f32 0.0, %v897
        %v899 = vpop.f32.mrb[0].mxu0
        %v900 = vadd.f32 0.0, %v899
        %v901 = vpop.f32.mrb[0].mxu0
        %v902 = vadd.f32 0.0, %v901
        %903 = vmatprep.mubr.bf16.mxu0 0
        %904 = vmatmul.mubr.bf16.gmra.mrb[0].mxu0 %v839
        %v905 = vpop.f32.mrb[0].mxu0
        %v906 = vadd.f32 0.0, %v905
        %v907 = vpop.f32.mrb[0].mxu0
        %v908 = vadd.f32 0.0, %v907
        %v909 = vpop.f32.mrb[0].mxu0
        %v910 = vadd.f32 0.0, %v909
        %v911 = vpop.f32.mrb[0].mxu0
        %v912 = vadd.f32 0.0, %v911
        %913 = vdwg.mxu0
        %914 = vmatprep.subr.bf16.mxu0 %v807
        %915 = vmatpush1.bf16.msra.mxu0 %v806
        %916 = vmatprep.subr.bf16.mxu0 0
        %917 = vmatpush1.bf16.msra.mxu0 0
        %918 = vmatprep.subr.bf16.mxu0 0
        %919 = vmatpush1.bf16.msra.mxu0 0
        %920 = vmatprep.subr.bf16.mxu0 0
        %921 = vmatpush1.bf16.msra.mxu0 0
        %922 = vmatprep.subr.bf16.mxu0 0
        %923 = vmatpush1.bf16.msra.mxu0 0
        %924 = vmatprep.subr.bf16.mxu0 0
        %925 = vmatpush1.bf16.msra.mxu0 0
        %926 = vmatprep.subr.bf16.mxu0 0
        %927 = vmatpush1.bf16.msra.mxu0 0
        %928 = vmatprep.subr.bf16.mxu0 0
        %929 = vmatpush1.bf16.msra.mxu0 0
        %930 = vmatprep.subr.bf16.mxu0 0
        %931 = vmatpush1.bf16.msra.mxu0 0
        %932 = vmatprep.subr.bf16.mxu0 0
        %933 = vmatpush1.bf16.msra.mxu0 0
        %934 = vmatprep.subr.bf16.mxu0 0
        %935 = vmatpush1.bf16.msra.mxu0 0
        %936 = vmatprep.subr.bf16.mxu0 0
        %937 = vmatpush1.bf16.msra.mxu0 0
        %938 = vmatprep.subr.bf16.mxu0 0
        %939 = vmatpush1.bf16.msra.mxu0 0
        %940 = vmatprep.subr.bf16.mxu0 0
        %941 = vmatpush1.bf16.msra.mxu0 0
        %942 = vmatprep.subr.bf16.mxu0 0
        %943 = vmatpush1.bf16.msra.mxu0 0
        %944 = vmatprep.subr.bf16.mxu0 0
        %945 = vmatpush1.bf16.msra.mxu0 0
        %946 = vmatprep.mubr.bf16.mxu0 0
        %947 = vmatmul.mubr.bf16.gmra.mrb[0].mxu0 %v830
        %v948 = vpop.f32.mrb[0].mxu0
        %v949 = vadd.f32 0.0, %v948
        %v950 = vpop.f32.mrb[0].mxu0
        %v951 = vadd.f32 0.0, %v950
        %v952 = vpop.f32.mrb[0].mxu0
        %v953 = vadd.f32 0.0, %v952
        %v954 = vpop.f32.mrb[0].mxu0
        %v955 = vadd.f32 0.0, %v954
        %956 = vmatprep.mubr.bf16.mxu0 0
        %957 = vmatmul.mubr.bf16.gmra.mrb[0].mxu0 %v833
        %v958 = vpop.f32.mrb[0].mxu0
        %v959 = vadd.f32 0.0, %v958
        %v960 = vpop.f32.mrb[0].mxu0
        %v961 = vadd.f32 0.0, %v960
        %v962 = vpop.f32.mrb[0].mxu0
        %v963 = vadd.f32 0.0, %v962
        %v964 = vpop.f32.mrb[0].mxu0
        %v965 = vadd.f32 0.0, %v964
        %966 = vmatprep.mubr.bf16.mxu0 0
        %967 = vmatmul.mubr.bf16.gmra.mrb[0].mxu0 %v836
        %v968 = vpop.f32.mrb[0].mxu0
        %v969 = vadd.f32 0.0, %v968
        %v970 = vpop.f32.mrb[0].mxu0
        %v971 = vadd.f32 0.0, %v970
        %v972 = vpop.f32.mrb[0].mxu0
        %v973 = vadd.f32 0.0, %v972
        %v974 = vpop.f32.mrb[0].mxu0
        %v975 = vadd.f32 0.0, %v974
        %976 = vmatprep.mubr.bf16.mxu0 0
        %977 = vmatmul.mubr.bf16.gmra.mrb[0].mxu0 %v839
        %v978 = vpop.f32.mrb[0].mxu0
        %v979 = vadd.f32 0.0, %v978
        %v980 = vpop.f32.mrb[0].mxu0
        %v981 = vadd.f32 0.0, %v980
        %v982 = vpop.f32.mrb[0].mxu0
        %v983 = vadd.f32 0.0, %v982
        %v984 = vpop.f32.mrb[0].mxu0
        %v985 = vadd.f32 0.0, %v984
        %986 = vdwg.mxu0
        %v987 = vadd.f32 %v502, %v876
        %v988 = vadd.f32 %v504, %v878
        %v989 = vadd.f32 %v615, %v949
        %v990 = vadd.f32 %v617, %v951
        %v991 = vadd.f32 %v506, %v880
        %v992 = vadd.f32 %v508, %v882
        %v993 = vadd.f32 %v619, %v953
        %v994 = vadd.f32 %v621, %v955
        %v995 = vadd.f32 %v512, %v886
        %v996 = vadd.f32 %v514, %v888
        %v997 = vadd.f32 %v625, %v959
        %v998 = vadd.f32 %v627, %v961
        %v999 = vadd.f32 %v516, %v890
        %v1000 = vadd.f32 %v518, %v892
        %v1001 = vadd.f32 %v629, %v963
        %v1002 = vadd.f32 %v631, %v965
        %v1003 = vadd.f32 %v522, %v896
        %v1004 = vadd.f32 %v524, %v898
        %v1005 = vadd.f32 %v635, %v969
        %v1006 = vadd.f32 %v637, %v971
        %v1007 = vadd.f32 %v526, %v900
        %v1008 = vadd.f32 %v528, %v902
        %v1009 = vadd.f32 %v639, %v973
        %v1010 = vadd.f32 %v641, %v975
        %v1011 = vadd.f32 %v532, %v906
        %v1012 = vadd.f32 %v534, %v908
        %v1013 = vadd.f32 %v645, %v979
        %v1014 = vadd.f32 %v647, %v981
        %v1015 = vadd.f32 %v536, %v910
        %v1016 = vadd.f32 %v538, %v912
        %v1017 = vadd.f32 %v649, %v983
        %v1018 = vadd.f32 %v651, %v985
        %v1019 = vmax.f32 %v987, 0.0
        %v1020 = vmax.f32 %v988, 0.0
        %v1021 = vmax.f32 %v989, 0.0
        %v1022 = vmax.f32 %v990, 0.0
        %v1023 = vmax.f32 %v991, 0.0
        %v1024 = vmax.f32 %v992, 0.0
        %v1025 = vmax.f32 %v993, 0.0
        %v1026 = vmax.f32 %v994, 0.0
        %v1027 = vmax.f32 %v995, 0.0
        %v1028 = vmax.f32 %v996, 0.0
        %v1029 = vmax.f32 %v997, 0.0
        %v1030 = vmax.f32 %v998, 0.0
        %v1031 = vmax.f32 %v999, 0.0
        %v1032 = vmax.f32 %v1000, 0.0
        %v1033 = vmax.f32 %v1001, 0.0
        %v1034 = vmax.f32 %v1002, 0.0
        %v1035 = vmax.f32 %v1003, 0.0
        %v1036 = vmax.f32 %v1004, 0.0
        %v1037 = vmax.f32 %v1005, 0.0
        %v1038 = vmax.f32 %v1006, 0.0
        %v1039 = vmax.f32 %v1007, 0.0
        %v1040 = vmax.f32 %v1008, 0.0
        %v1041 = vmax.f32 %v1009, 0.0
        %v1042 = vmax.f32 %v1010, 0.0
        %v1043 = vmax.f32 %v1011, 0.0
        %v1044 = vmax.f32 %v1012, 0.0
        %v1045 = vmax.f32 %v1013, 0.0
        %v1046 = vmax.f32 %v1014, 0.0
        %v1047 = vmax.f32 %v1015, 0.0
        %v1048 = vmax.f32 %v1016, 0.0
        %v1049 = vmax.f32 %v1017, 0.0
        %v1050 = vmax.f32 %v1018, 0.0
        %v1051 = vpack.c.bf16 %v1023, %v1019
        %v1052 = vpack.c.bf16 %v1024, %v1020
        %v1053 = vpack.c.bf16 %v1025, %v1021
        %v1054 = vpack.c.bf16 %v1026, %v1022
        %v1055 = vpack.c.bf16 %v1031, %v1027
        %v1056 = vpack.c.bf16 %v1032, %v1028
        %v1057 = vpack.c.bf16 %v1033, %v1029
        %v1058 = vpack.c.bf16 %v1034, %v1030
        %v1059 = vpack.c.bf16 %v1039, %v1035
        %v1060 = vpack.c.bf16 %v1040, %v1036
        %v1061 = vpack.c.bf16 %v1041, %v1037
        %v1062 = vpack.c.bf16 %v1042, %v1038
        %v1063 = vpack.c.bf16 %v1047, %v1043
        %v1064 = vpack.c.bf16 %v1048, %v1044
        %v1065 = vpack.c.bf16 %v1049, %v1045
        %v1066 = vpack.c.bf16 %v1050, %v1046
        %v1075 = vunpack.c.l.b16 %v353
        %v1076 = vunpack.c.l.b16 %v354
        %v1077 = vunpack.c.l.b16 %v355
        %v1078 = vunpack.c.l.b16 %v356
        %v1079 = vunpack.c.l.b16 %v357
        %v1080 = vunpack.c.l.b16 %v358
        %v1081 = vunpack.c.l.b16 %v359
        %v1082 = vunpack.c.l.b16 %v360
        %v1083 = vpack.c.b16 %v1076, %v1075
        %v1084 = vpack.c.b16 %v1078, %v1077
        %v1085 = vpack.c.b16 %v1080, %v1079
        %v1086 = vpack.c.b16 %v1082, %v1081
        %v1088 = vsel %vm706, %v1083, 0
        %v1091 = vsel %vm706, %v1084, 0
        %v1094 = vsel %vm706, %v1085, 0
        %v1097 = vsel %vm706, %v1086, 0
        %1099 = vmatprep.subr.bf16.mxu0 %v1052
        %1100 = vmatpush1.bf16.msra.mxu0 %v1051
        %1101 = vmatprep.subr.bf16.mxu0 %v1056
        %1102 = vmatpush1.bf16.msra.mxu0 %v1055
        %1103 = vmatprep.subr.bf16.mxu0 %v1060
        %1104 = vmatpush1.bf16.msra.mxu0 %v1059
        %1105 = vmatprep.subr.bf16.mxu0 %v1064
        %1106 = vmatpush1.bf16.msra.mxu0 %v1063
        %1107 = vmatprep.subr.bf16.mxu0 0
        %1108 = vmatpush1.bf16.msra.mxu0 0
        %1109 = vmatprep.subr.bf16.mxu0 0
        %1110 = vmatpush1.bf16.msra.mxu0 0
        %1111 = vmatprep.subr.bf16.mxu0 0
        %1112 = vmatpush1.bf16.msra.mxu0 0
        %1113 = vmatprep.subr.bf16.mxu0 0
        %1114 = vmatpush1.bf16.msra.mxu0 0
        %1115 = vmatprep.subr.bf16.mxu0 0
        %1116 = vmatpush1.bf16.msra.mxu0 0
        %1117 = vmatprep.subr.bf16.mxu0 0
        %1118 = vmatpush1.bf16.msra.mxu0 0
        %1119 = vmatprep.subr.bf16.mxu0 0
        %1120 = vmatpush1.bf16.msra.mxu0 0
        %1121 = vmatprep.subr.bf16.mxu0 0
        %1122 = vmatpush1.bf16.msra.mxu0 0
        %1123 = vmatprep.subr.bf16.mxu0 0
        %1124 = vmatpush1.bf16.msra.mxu0 0
        %1125 = vmatprep.subr.bf16.mxu0 0
        %1126 = vmatpush1.bf16.msra.mxu0 0
        %1127 = vmatprep.subr.bf16.mxu0 0
        %1128 = vmatpush1.bf16.msra.mxu0 0
        %1129 = vmatprep.subr.bf16.mxu0 0
        %1130 = vmatpush1.bf16.msra.mxu0 0
        %1131 = vmatprep.mubr.bf16.mxu0 0
        %1132 = vmatmul.mubr.bf16.gmra.mrb[0].mxu0 %v1088
        %v1133 = vpop.f32.mrb[0].mxu0
        %v1134 = vadd.f32 0.0, %v1133
        %v1135 = vpop.f32.mrb[0].mxu0
        %v1136 = vadd.f32 0.0, %v1135
        %v1137 = vpop.f32.mrb[0].mxu0
        %v1138 = vadd.f32 0.0, %v1137
        %v1139 = vpop.f32.mrb[0].mxu0
        %v1140 = vadd.f32 0.0, %v1139
        %1141 = vmatprep.mubr.bf16.mxu0 0
        %1142 = vmatmul.mubr.bf16.gmra.mrb[0].mxu0 %v1091
        %v1143 = vpop.f32.mrb[0].mxu0
        %v1144 = vadd.f32 0.0, %v1143
        %v1145 = vpop.f32.mrb[0].mxu0
        %v1146 = vadd.f32 0.0, %v1145
        %v1147 = vpop.f32.mrb[0].mxu0
        %v1148 = vadd.f32 0.0, %v1147
        %v1149 = vpop.f32.mrb[0].mxu0
        %v1150 = vadd.f32 0.0, %v1149
        %1151 = vmatprep.mubr.bf16.mxu0 0
        %1152 = vmatmul.mubr.bf16.gmra.mrb[0].mxu0 %v1094
        %v1153 = vpop.f32.mrb[0].mxu0
        %v1154 = vadd.f32 0.0, %v1153
        %v1155 = vpop.f32.mrb[0].mxu0
        %v1156 = vadd.f32 0.0, %v1155
        %v1157 = vpop.f32.mrb[0].mxu0
        %v1158 = vadd.f32 0.0, %v1157
        %v1159 = vpop.f32.mrb[0].mxu0
        %v1160 = vadd.f32 0.0, %v1159
        %1161 = vmatprep.mubr.bf16.mxu0 0
        %1162 = vmatmul.mubr.bf16.gmra.mrb[0].mxu0 %v1097
        %v1163 = vpop.f32.mrb[0].mxu0
        %v1164 = vadd.f32 0.0, %v1163
        %v1165 = vpop.f32.mrb[0].mxu0
        %v1166 = vadd.f32 0.0, %v1165
        %v1167 = vpop.f32.mrb[0].mxu0
        %v1168 = vadd.f32 0.0, %v1167
        %v1169 = vpop.f32.mrb[0].mxu0
        %v1170 = vadd.f32 0.0, %v1169
        %1171 = vdwg.mxu0
        %1172 = vmatprep.subr.bf16.mxu0 %v1054
        %1173 = vmatpush1.bf16.msra.mxu0 %v1053
        %1174 = vmatprep.subr.bf16.mxu0 %v1058
        %1175 = vmatpush1.bf16.msra.mxu0 %v1057
        %1176 = vmatprep.subr.bf16.mxu0 %v1062
        %1177 = vmatpush1.bf16.msra.mxu0 %v1061
        %1178 = vmatprep.subr.bf16.mxu0 %v1066
        %1179 = vmatpush1.bf16.msra.mxu0 %v1065
        %1180 = vmatprep.subr.bf16.mxu0 0
        %1181 = vmatpush1.bf16.msra.mxu0 0
        %1182 = vmatprep.subr.bf16.mxu0 0
        %1183 = vmatpush1.bf16.msra.mxu0 0
        %1184 = vmatprep.subr.bf16.mxu0 0
        %1185 = vmatpush1.bf16.msra.mxu0 0
        %1186 = vmatprep.subr.bf16.mxu0 0
        %1187 = vmatpush1.bf16.msra.mxu0 0
        %1188 = vmatprep.subr.bf16.mxu0 0
        %1189 = vmatpush1.bf16.msra.mxu0 0
        %1190 = vmatprep.subr.bf16.mxu0 0
        %1191 = vmatpush1.bf16.msra.mxu0 0
        %1192 = vmatprep.subr.bf16.mxu0 0
        %1193 = vmatpush1.bf16.msra.mxu0 0
        %1194 = vmatprep.subr.bf16.mxu0 0
        %1195 = vmatpush1.bf16.msra.mxu0 0
        %1196 = vmatprep.subr.bf16.mxu0 0
        %1197 = vmatpush1.bf16.msra.mxu0 0
        %1198 = vmatprep.subr.bf16.mxu0 0
        %1199 = vmatpush1.bf16.msra.mxu0 0
        %1200 = vmatprep.subr.bf16.mxu0 0
        %1201 = vmatpush1.bf16.msra.mxu0 0
        %1202 = vmatprep.subr.bf16.mxu0 0
        %1203 = vmatpush1.bf16.msra.mxu0 0
        %1204 = vmatprep.mubr.bf16.mxu0 0
        %1205 = vmatmul.mubr.bf16.gmra.mrb[0].mxu0 %v1088
        %v1206 = vpop.f32.mrb[0].mxu0
        %v1207 = vadd.f32 0.0, %v1206
        %v1208 = vpop.f32.mrb[0].mxu0
        %v1209 = vadd.f32 0.0, %v1208
        %v1210 = vpop.f32.mrb[0].mxu0
        %v1211 = vadd.f32 0.0, %v1210
        %v1212 = vpop.f32.mrb[0].mxu0
        %v1213 = vadd.f32 0.0, %v1212
        %1214 = vmatprep.mubr.bf16.mxu0 0
        %1215 = vmatmul.mubr.bf16.gmra.mrb[0].mxu0 %v1091
        %v1216 = vpop.f32.mrb[0].mxu0
        %v1217 = vadd.f32 0.0, %v1216
        %v1218 = vpop.f32.mrb[0].mxu0
        %v1219 = vadd.f32 0.0, %v1218
        %v1220 = vpop.f32.mrb[0].mxu0
        %v1221 = vadd.f32 0.0, %v1220
        %v1222 = vpop.f32.mrb[0].mxu0
        %v1223 = vadd.f32 0.0, %v1222
        %1224 = vmatprep.mubr.bf16.mxu0 0
        %1225 = vmatmul.mubr.bf16.gmra.mrb[0].mxu0 %v1094
        %v1226 = vpop.f32.mrb[0].mxu0
        %v1227 = vadd.f32 0.0, %v1226
        %v1228 = vpop.f32.mrb[0].mxu0
        %v1229 = vadd.f32 0.0, %v1228
        %v1230 = vpop.f32.mrb[0].mxu0
        %v1231 = vadd.f32 0.0, %v1230
        %v1232 = vpop.f32.mrb[0].mxu0
        %v1233 = vadd.f32 0.0, %v1232
        %1234 = vmatprep.mubr.bf16.mxu0 0
        %1235 = vmatmul.mubr.bf16.gmra.mrb[0].mxu0 %v1097
        %v1236 = vpop.f32.mrb[0].mxu0
        %v1237 = vadd.f32 0.0, %v1236
        %v1238 = vpop.f32.mrb[0].mxu0
        %v1239 = vadd.f32 0.0, %v1238
        %v1240 = vpop.f32.mrb[0].mxu0
        %v1241 = vadd.f32 0.0, %v1240
        %v1242 = vpop.f32.mrb[0].mxu0
        %v1243 = vadd.f32 0.0, %v1242
        %1244 = vdwg.mxu0
        %v1245 = vmax.f32 %v1134, 0.0
        %v1246 = vmax.f32 %v1136, 0.0
        %v1247 = vmax.f32 %v1207, 0.0
        %v1248 = vmax.f32 %v1209, 0.0
        %v1249 = vmax.f32 %v1138, 0.0
        %v1250 = vmax.f32 %v1140, 0.0
        %v1251 = vmax.f32 %v1211, 0.0
        %v1252 = vmax.f32 %v1213, 0.0
        %v1253 = vmax.f32 %v1144, 0.0
        %v1254 = vmax.f32 %v1146, 0.0
        %v1255 = vmax.f32 %v1217, 0.0
        %v1256 = vmax.f32 %v1219, 0.0
        %v1257 = vmax.f32 %v1148, 0.0
        %v1258 = vmax.f32 %v1150, 0.0
        %v1259 = vmax.f32 %v1221, 0.0
        %v1260 = vmax.f32 %v1223, 0.0
        %v1261 = vmax.f32 %v1154, 0.0
        %v1262 = vmax.f32 %v1156, 0.0
        %v1263 = vmax.f32 %v1227, 0.0
        %v1264 = vmax.f32 %v1229, 0.0
        %v1265 = vmax.f32 %v1158, 0.0
        %v1266 = vmax.f32 %v1160, 0.0
        %v1267 = vmax.f32 %v1231, 0.0
        %v1268 = vmax.f32 %v1233, 0.0
        %v1269 = vmax.f32 %v1164, 0.0
        %v1270 = vmax.f32 %v1166, 0.0
        %v1271 = vmax.f32 %v1237, 0.0
        %v1272 = vmax.f32 %v1239, 0.0
        %v1273 = vmax.f32 %v1168, 0.0
        %v1274 = vmax.f32 %v1170, 0.0
        %v1275 = vmax.f32 %v1241, 0.0
        %v1276 = vmax.f32 %v1243, 0.0
        %v1277 = vpack.c.bf16 %v1249, %v1245
        %v1278 = vpack.c.bf16 %v1250, %v1246
        %v1279 = vpack.c.bf16 %v1251, %v1247
        %v1280 = vpack.c.bf16 %v1252, %v1248
        %v1281 = vpack.c.bf16 %v1257, %v1253
        %v1282 = vpack.c.bf16 %v1258, %v1254
        %v1283 = vpack.c.bf16 %v1259, %v1255
        %v1284 = vpack.c.bf16 %v1260, %v1256
        %v1285 = vpack.c.bf16 %v1265, %v1261
        %v1286 = vpack.c.bf16 %v1266, %v1262
        %v1287 = vpack.c.bf16 %v1267, %v1263
        %v1288 = vpack.c.bf16 %v1268, %v1264
        %v1289 = vpack.c.bf16 %v1273, %v1269
        %v1290 = vpack.c.bf16 %v1274, %v1270
        %v1291 = vpack.c.bf16 %v1275, %v1271
        %v1292 = vpack.c.bf16 %v1276, %v1272
        %v1294 = vsel %vm706, %v361, 0
        %1296 = vmatprep.subr.bf16.mxu0 %v1278
        %1297 = vmatpush1.bf16.msra.mxu0 %v1277
        %1298 = vmatprep.subr.bf16.mxu0 %v1282
        %1299 = vmatpush1.bf16.msra.mxu0 %v1281
        %1300 = vmatprep.subr.bf16.mxu0 %v1286
        %1301 = vmatpush1.bf16.msra.mxu0 %v1285
        %1302 = vmatprep.subr.bf16.mxu0 %v1290
        %1303 = vmatpush1.bf16.msra.mxu0 %v1289
        %1304 = vmatprep.subr.bf16.mxu0 0
        %1305 = vmatpush1.bf16.msra.mxu0 0
        %1306 = vmatprep.subr.bf16.mxu0 0
        %1307 = vmatpush1.bf16.msra.mxu0 0
        %1308 = vmatprep.subr.bf16.mxu0 0
        %1309 = vmatpush1.bf16.msra.mxu0 0
        %1310 = vmatprep.subr.bf16.mxu0 0
        %1311 = vmatpush1.bf16.msra.mxu0 0
        %1312 = vmatprep.subr.bf16.mxu0 0
        %1313 = vmatpush1.bf16.msra.mxu0 0
        %1314 = vmatprep.subr.bf16.mxu0 0
        %1315 = vmatpush1.bf16.msra.mxu0 0
        %1316 = vmatprep.subr.bf16.mxu0 0
        %1317 = vmatpush1.bf16.msra.mxu0 0
        %1318 = vmatprep.subr.bf16.mxu0 0
        %1319 = vmatpush1.bf16.msra.mxu0 0
        %1320 = vmatprep.subr.bf16.mxu0 0
        %1321 = vmatpush1.bf16.msra.mxu0 0
        %1322 = vmatprep.subr.bf16.mxu0 0
        %1323 = vmatpush1.bf16.msra.mxu0 0
        %1324 = vmatprep.subr.bf16.mxu0 0
        %1325 = vmatpush1.bf16.msra.mxu0 0
        %1326 = vmatprep.subr.bf16.mxu0 0
        %1327 = vmatpush1.bf16.msra.mxu0 0
        %1328 = vmatprep.mubr.bf16.mxu0 0
        %1329 = vmatmul.mubr.bf16.gmra.mrb[0].mxu0 %v1294
        %v1330 = vpop.f32.mrb[0].mxu0
        %v1331 = vadd.f32 0.0, %v1330
        %v1332 = vpop.f32.mrb[0].mxu0
        %v1333 = vadd.f32 0.0, %v1332
        %v1334 = vpop.f32.mrb[0].mxu0
        %v1335 = vpop.f32.mrb[0].mxu0
        %1336 = vdwg.mxu0
        %1337 = vmatprep.subr.bf16.mxu0 %v1280
        %1338 = vmatpush1.bf16.msra.mxu0 %v1279
        %1339 = vmatprep.subr.bf16.mxu0 %v1284
        %1340 = vmatpush1.bf16.msra.mxu0 %v1283
        %1341 = vmatprep.subr.bf16.mxu0 %v1288
        %1342 = vmatpush1.bf16.msra.mxu0 %v1287
        %1343 = vmatprep.subr.bf16.mxu0 %v1292
        %1344 = vmatpush1.bf16.msra.mxu0 %v1291
        %1345 = vmatprep.subr.bf16.mxu0 0
        %1346 = vmatpush1.bf16.msra.mxu0 0
        %1347 = vmatprep.subr.bf16.mxu0 0
        %1348 = vmatpush1.bf16.msra.mxu0 0
        %1349 = vmatprep.subr.bf16.mxu0 0
        %1350 = vmatpush1.bf16.msra.mxu0 0
        %1351 = vmatprep.subr.bf16.mxu0 0
        %1352 = vmatpush1.bf16.msra.mxu0 0
        %1353 = vmatprep.subr.bf16.mxu0 0
        %1354 = vmatpush1.bf16.msra.mxu0 0
        %1355 = vmatprep.subr.bf16.mxu0 0
        %1356 = vmatpush1.bf16.msra.mxu0 0
        %1357 = vmatprep.subr.bf16.mxu0 0
        %1358 = vmatpush1.bf16.msra.mxu0 0
        %1359 = vmatprep.subr.bf16.mxu0 0
        %1360 = vmatpush1.bf16.msra.mxu0 0
        %1361 = vmatprep.subr.bf16.mxu0 0
        %1362 = vmatpush1.bf16.msra.mxu0 0
        %1363 = vmatprep.subr.bf16.mxu0 0
        %1364 = vmatpush1.bf16.msra.mxu0 0
        %1365 = vmatprep.subr.bf16.mxu0 0
        %1366 = vmatpush1.bf16.msra.mxu0 0
        %1367 = vmatprep.subr.bf16.mxu0 0
        %1368 = vmatpush1.bf16.msra.mxu0 0
        %1369 = vmatprep.mubr.bf16.mxu0 0
        %1370 = vmatmul.mubr.bf16.gmra.mrb[0].mxu0 %v1294
        %v1371 = vpop.f32.mrb[0].mxu0
        %v1372 = vadd.f32 0.0, %v1371
        %v1373 = vpop.f32.mrb[0].mxu0
        %v1374 = vadd.f32 0.0, %v1373
        %v1375 = vpop.f32.mrb[0].mxu0
        %v1376 = vpop.f32.mrb[0].mxu0
        %1377 = vdwg.mxu0
        %v1382 = vcombine.low %v797, %v799
        %v1383 = vcombine.low %v801, %v803
        %v1385 = vunpack.c.l.s4 1966171168
        %v1386 = vunpack.c.0.s8 %v1385
        %v1387 = vlaneseq
        %v1388 = vshrl.u32 %v1387, 7
        %v1389 = vsub.s32 %v1386, %v1388
        %v1390 = vrot.slane %v1382, %v1389
        %v1392 = vunpack.c.l.s4 1966171168
        %v1393 = vunpack.c.0.s8 %v1392
        %v1394 = vlaneseq
        %v1395 = vshrl.u32 %v1394, 7
        %v1396 = vsub.s32 %v1393, %v1395
        %v1397 = vrot.slane %v1383, %v1396
        %v1398 = vcombine.low %v1390, %v1397
        %v1400 = vunpack.c.l.s4 1966171168
        %v1401 = vunpack.c.0.s8 %v1400
        %v1402 = vlaneseq
        %v1403 = vshrl.u32 %v1402, 7
        %v1404 = vsub.s32 %v1401, %v1403
        %v1405 = vrot.slane %v1398, %v1404
        %v1407 = vlaneseq
        %vm1408 = vcmp.ge.s32.totalorder %v1407, 0
        %vm1409 = vcmp.lt.s32.totalorder %v1407, 512
        %vm1410 = vmand %vm1408, %vm1409
        %1411 = vst.msk [vmem:[%s252] ss:$4 sm:$0xf] %vm1410, %v1405
        %v1412 = vxor.u32 %v1331, 2147483648
        %v1413 = vxor.u32 %v1333, 2147483648
        %v1414 = vxor.u32 %v1372, 2147483648
        %v1415 = vxor.u32 %v1374, 2147483648
        %v1416 = vmul.f32 %v1412, 1.442695
        %v1417 = vpow.pop %v1416
        %v1418 = vmul.f32 %v1413, 1.442695
        %v1419 = vpow.pop %v1418
        %v1420 = vmul.f32 %v1414, 1.442695
        %v1421 = vpow.pop %v1420
        %v1422 = vmul.f32 %v1415, 1.442695
        %v1423 = vpow.pop %v1422
        %v1424 = vadd.f32 %v1417, 1.0
        %v1425 = vadd.f32 %v1419, 1.0
        %v1426 = vadd.f32 %v1421, 1.0
        %v1427 = vadd.f32 %v1423, 1.0
        %v1428 = vrcp.pop %v1424
        %v1429 = vmul.f32 1.0, %v1428
        %v1430 = vrcp.pop %v1425
        %v1431 = vmul.f32 1.0, %v1430
        %v1432 = vrcp.pop %v1426
        %v1433 = vmul.f32 1.0, %v1432
        %v1434 = vrcp.pop %v1427
        %v1435 = vmul.f32 1.0, %v1434
        %v1440 = vcombine.low %v1429, %v1431
        %v1441 = vcombine.low %v1433, %v1435
        %v1442 = vrot.slane %v1440, 7
        %v1443 = vrot.slane %v1441, 7
        %1446 = vst [vmem:[%s252] sm:$0xee] %v1442
        %1447 = vst [vmem:[%s252 + $0x8] sm:$0xee] %v1443
        %s1448 = smul.u32 4, %s14
        %p1449 = scmp.lt.s32.totalorder %s1448, 7
        %s1450 = scalar_select %p1449, %s1448, 7
        %s1451 = smul.addr %s1450, 4
        %s1452 = scalar_lea.vmem %s3, %s1451
        // Predicated region
        $region79: #{ngp_forward.1} parent=69 // pred_check
          %p1453 = pneg %p105
        $region80: #{ngp_forward.1} parent=69 // pred_check_branch
          %1455 = sbr.rel (%p1453) target = $region82
        $region81: #{ngp_forward.1} parent=69 // pred_region
          %s1456 = smul.u32 4, %s14
        $region82: #{ngp_forward.1} parent=69 // pred_fallthru
          _
      $region70: #{ngp_forward.1} parent=5 // pred_fallthru
        _
      %p1457 = scmp.le.s32.totalorder 2, %s9
      // Predicated region
      $region83: #{ngp_forward.1} parent=5 // pred_check
        %p1458 = pneg %p1457
      $region84: #{ngp_forward.1} parent=5 // pred_check_branch
        %1460 = sbr.rel (%p1458) target = $region86
      $region85: #{ngp_forward.1} parent=5 // pred_region
        %s1461 = ssub.s32 %s9, 2
        // Predicated region
        $region87: #{ngp_forward.1} parent=85 // pred_check
          %p1462 = pneg %p111
        $region88: #{ngp_forward.1} parent=85 // pred_check_branch
          %1464 = sbr.rel (%p1462) target = $region90
        $region89: #{ngp_forward.1} parent=85 // pred_region
          %s1465 = smul.u32 4, %s15
          %p1466 = scmp.lt.s32.totalorder %s1465, 7
          %s1467 = scalar_select %p1466, %s1465, 7
          %s1468 = smul.addr %s1467, 4
          %s1469 = scalar_lea.vmem %s3, %s1468
        $region90: #{ngp_forward.1} parent=85 // pred_fallthru
          _
      $region86: #{ngp_forward.1} parent=5 // pred_fallthru
        _
    $region6: #{ngp_forward.1} parent=1 // loop_footer
      %s13 = sadd.s32 1, %s9
    $region7: #{ngp_forward.1} parent=1 // loop_footer_branch
      %8 = sbr.rel target = $region3
    $region8: #{ngp_forward.1} parent=1 // loop_exit
      _

</llo_original>
